<compile_context>
chip_gen: v5e
topology: v5e:2x2
jax: 0.10.0
libtpu: 0.0.40
codegen_flags: <defaults>
</compile_context>

<pallas_src>
import functools

import jax
import jax.numpy as jnp
import numpy as np
from jax import lax
from jax.experimental import pallas as pl
from jax.experimental.pallas import tpu as pltpu


# ---------------------------------------------------------------------------
# Kernel 1: time-parallel input projection (one big MXU GEMM, bias folded in)
# ---------------------------------------------------------------------------
def _input_proj_kernel(x_ref, wih_ref, b_ref, out_ref):
    out_ref[...] = (
        jnp.dot(x_ref[...], wih_ref[...], preferred_element_type=jnp.float32)
        + b_ref[...]
    ).astype(out_ref.dtype)


def input_projection_pallas(x2d, wih_t, bias, *, row_tile=512):
    """x2d: (S*B_pad, Din); wih_t: (Din, 4H); bias: (1, 4H) -> pregates (S*B_pad, 4H) f32."""
    SB, Din = x2d.shape
    four_h = wih_t.shape[1]
    tm = min(row_tile, SB)                    # full-extent block when SB is small
    grid = (pl.cdiv(SB, tm),)
    return pl.pallas_call(
        _input_proj_kernel,
        out_shape=jax.ShapeDtypeStruct((SB, four_h), jnp.float32),
        grid=grid,
        in_specs=[
            pl.BlockSpec((tm, Din), lambda i: (i, 0)),
            pl.BlockSpec((Din, four_h), lambda i: (0, 0)),
            pl.BlockSpec((1, four_h), lambda i: (0, 0)),
        ],
        out_specs=pl.BlockSpec((tm, four_h), lambda i: (i, 0)),
        compiler_params=pltpu.CompilerParams(
            dimension_semantics=("parallel",)),
    )(x2d, wih_t, bias)


# ---------------------------------------------------------------------------
# Kernel 2: the sequential recurrence, chunked over time.
#   per step:  gates = pregates[t] + h @ W_hh^T
#              i,f,g,o = split(gates);  c = sig(f)*c + sig(i)*tanh(g);  h = sig(o)*tanh(c)
# ---------------------------------------------------------------------------
def _lstm_recurrence_kernel(pregates_ref, whh_ref, out_ref, hn_ref, cn_ref,
                            h_sc, c_sc, *, chunk, hidden, seq_len, unroll):
    ci = pl.program_id(0)
    n_chunks = pl.num_programs(0)
    H = hidden

    @pl.when(ci == 0)
    def _():
        h_sc[...] = jnp.zeros_like(h_sc)
        c_sc[...] = jnp.zeros_like(c_sc)

    def step(t, carry):
        h, c = carry
        gates = pregates_ref[t] + jnp.dot(
            h, whh_ref[...], preferred_element_type=jnp.float32)      # (B_pad, 4H)
        i = jax.nn.sigmoid(gates[:, 0 * H:1 * H])
        f = jax.nn.sigmoid(gates[:, 1 * H:2 * H])
        g = jnp.tanh(gates[:, 2 * H:3 * H])
        o = jax.nn.sigmoid(gates[:, 3 * H:4 * H])
        c_new = f * c + i * g
        h_new = o * jnp.tanh(c_new)
        out_ref[t] = h_new.astype(out_ref.dtype)   # VMEM block; HBM writeback per chunk
        return (h_new, c_new)

    carry0 = (h_sc[...], c_sc[...])
    if seq_len % chunk == 0:
        # Every chunk is full: static trip count -> unrolled for LLO visibility.
        h, c = lax.fori_loop(0, chunk, step, carry0, unroll=unroll)
    else:
        # Ragged tail: dynamic (<= chunk) trip count.
        n_valid = jnp.minimum(chunk, seq_len - ci * chunk)
        h, c = lax.fori_loop(0, n_valid, step, carry0)

    h_sc[...] = h
    c_sc[...] = c

    @pl.when(ci == n_chunks - 1)
    def _():
        hn_ref[...] = h.astype(hn_ref.dtype)
        cn_ref[...] = c.astype(cn_ref.dtype)


def _lstm_layer_padded(x, w_ih, w_hh, b_ih, b_hh, *, time_chunk=32):
    """x: (S, B_pad, Din) with B_pad % 8 == 0.  Returns (out (S,B_pad,H), hn, cn)."""
    S, B_pad, Din = x.shape
    H = w_hh.shape[1]

    wih_t = jnp.asarray(w_ih, jnp.float32).T                         # (Din, 4H)
    whh_t = jnp.asarray(w_hh, jnp.float32).T                         # (H, 4H)
    bias = (jnp.asarray(b_ih, jnp.float32)
            + jnp.asarray(b_hh, jnp.float32)).reshape(1, 4 * H)

    # (1) Hoisted, time-parallel input projection with bias folded in.
    pregates = input_projection_pallas(x.reshape(S * B_pad, Din), wih_t, bias)
    pregates = pregates.reshape(S, B_pad, 4 * H)

    # (2) Chunk the sequence so VMEM stays bounded and pregate fetch / output
    #     writeback pipeline with the recurrence.
    chunk = min(time_chunk, S)
    n_chunks = pl.cdiv(S, chunk)
    S_pad = n_chunks * chunk
    if S_pad != S:
        pregates = jnp.pad(pregates, ((0, S_pad - S), (0, 0), (0, 0)))

    unroll = True if chunk <= 32 else 8

    kernel = functools.partial(
        _lstm_recurrence_kernel,
        chunk=chunk, hidden=H, seq_len=S, unroll=unroll)

    out, hn, cn = pl.pallas_call(
        kernel,
        out_shape=(
            jax.ShapeDtypeStruct((S_pad, B_pad, H), jnp.float32),
            jax.ShapeDtypeStruct((B_pad, H), jnp.float32),
            jax.ShapeDtypeStruct((B_pad, H), jnp.float32),
        ),
        grid=(n_chunks,),
        in_specs=[
            pl.BlockSpec((chunk, B_pad, 4 * H), lambda c: (c, 0, 0)),  # pregates chunk
            pl.BlockSpec((H, 4 * H), lambda c: (0, 0)),                # W_hh^T (resident)
        ],
        out_specs=(
            pl.BlockSpec((chunk, B_pad, H), lambda c: (c, 0, 0)),
            pl.BlockSpec((B_pad, H), lambda c: (0, 0)),
            pl.BlockSpec((B_pad, H), lambda c: (0, 0)),
        ),
        scratch_shapes=[
            pltpu.VMEM((B_pad, H), jnp.float32),    # h carried across chunks
            pltpu.VMEM((B_pad, H), jnp.float32),    # c carried across chunks
        ],
        compiler_params=pltpu.CompilerParams(
            dimension_semantics=("arbitrary",)),
    )(pregates, whh_t)

    return out[:S], hn, cn


def encoder_lstm_forward(x, params, *, time_chunk=32):
    """Stacked LSTM forward.  x: (S, B, Din); params: list of per-layer dicts."""
    S, B, _ = x.shape
    B_pad = ((B + 7) // 8) * 8

    # (3) Pad batch once on the small input; keep padded rows through all layers.
    layer_in = x.astype(jnp.float32)
    if B_pad != B:
        layer_in = jnp.pad(layer_in, ((0, 0), (0, B_pad - B), (0, 0)))

    hns, cns = [], []
    for p in params:
        layer_in, hn, cn = _lstm_layer_padded(
            layer_in, p["w_ih"], p["w_hh"], p["b_ih"], p["b_hh"],
            time_chunk=time_chunk)
        hns.append(hn)
        cns.append(cn)

    out = layer_in[:, :B].astype(x.dtype)
    hn = jnp.stack(hns, axis=0)[:, :B].astype(x.dtype)   # (num_layers, B, H)
    cn = jnp.stack(cns, axis=0)[:, :B].astype(x.dtype)
    return out, (hn, cn)


# ---------------------------------------------------------------------------
# Pure-JAX reference (matches torch.nn.LSTM semantics) + param init
# ---------------------------------------------------------------------------
def encoder_lstm_reference(x, params):
    layer_in = x.astype(jnp.float32)
    hns, cns = [], []
    for p in params:
        H = p["w_hh"].shape[1]
        wih_t, whh_t = p["w_ih"].T, p["w_hh"].T
        b = p["b_ih"] + p["b_hh"]
        B = layer_in.shape[1]
        h = jnp.zeros((B, H), jnp.float32)
        c = jnp.zeros((B, H), jnp.float32)

        def step(carry, x_t):
            h, c = carry
            gates = x_t @ wih_t + h @ whh_t + b
            i = jax.nn.sigmoid(gates[:, 0 * H:1 * H])
            f = jax.nn.sigmoid(gates[:, 1 * H:2 * H])
            g = jnp.tanh(gates[:, 2 * H:3 * H])
            o = jax.nn.sigmoid(gates[:, 3 * H:4 * H])
            c = f * c + i * g
            h = o * jnp.tanh(c)
            return (h, c), h

        (h, c), outs = jax.lax.scan(step, (h, c), layer_in)
        layer_in = outs
        hns.append(h)
        cns.append(c)
    return layer_in, (jnp.stack(hns, 0), jnp.stack(cns, 0))


def init_params(key, input_dim, hidden_dim, num_layers):
    k = 1.0 / np.sqrt(hidden_dim)
    params = []
    for layer in range(num_layers):
        din = input_dim if layer == 0 else hidden_dim
        key, k1, k2, k3, k4 = jax.random.split(key, 5)
        params.append({
            "w_ih": jax.random.uniform(k1, (4 * hidden_dim, din), jnp.float32, -k, k),
            "w_hh": jax.random.uniform(k2, (4 * hidden_dim, hidden_dim), jnp.float32, -k, k),
            "b_ih": jax.random.uniform(k3, (4 * hidden_dim,), jnp.float32, -k, k),
            "b_hh": jax.random.uniform(k4, (4 * hidden_dim,), jnp.float32, -k, k),
        })
    return params


def _check(out, hn, cn, ref_out, ref_hn, ref_cn):
    np.testing.assert_allclose(np.asarray(out), np.asarray(ref_out), rtol=2e-5, atol=2e-5)
    np.testing.assert_allclose(np.asarray(hn), np.asarray(ref_hn), rtol=2e-5, atol=2e-5)
    np.testing.assert_allclose(np.asarray(cn), np.asarray(ref_cn), rtol=2e-5, atol=2e-5)


if __name__ == "__main__":
    # --- main config (matches the module's intended small shapes) ------------
    SEQ, BATCH, IN_DIM, HIDDEN, LAYERS = 8, 2, 16, 32, 2

    key = jax.random.PRNGKey(0)
    key, xkey = jax.random.split(key)
    x = jax.random.normal(xkey, (SEQ, BATCH, IN_DIM), jnp.float32)  # batch_first=False layout
    params = init_params(key, IN_DIM, HIDDEN, LAYERS)

    fwd = jax.jit(encoder_lstm_forward)
    out, (hn, cn) = fwd(x, params)
    jax.block_until_ready(out)
    jax.block_until_ready(hn)
    jax.block_until_ready(cn)

    ref_out, (ref_hn, ref_cn) = encoder_lstm_reference(x, params)
    _check(out, hn, cn, ref_out, ref_hn, ref_cn)
    assert out.shape == (SEQ, BATCH, HIDDEN)
    assert hn.shape == (LAYERS, BATCH, HIDDEN) and cn.shape == (LAYERS, BATCH, HIDDEN)

    # --- secondary config: exercises multi-chunk + ragged-tail paths ---------
    SEQ2, BATCH2 = 13, 3
    key, xkey2, pkey2 = jax.random.split(key, 3)
    x2 = jax.random.normal(xkey2, (SEQ2, BATCH2, IN_DIM), jnp.float32)
    params2 = init_params(pkey2, IN_DIM, HIDDEN, 1)
    out2, (hn2, cn2) = encoder_lstm_forward(x2, params2, time_chunk=4)
    jax.block_until_ready(out2)
    ref_out2, (ref_hn2, ref_cn2) = encoder_lstm_reference(x2, params2)
    _check(out2, hn2, cn2, ref_out2, ref_hn2, ref_cn2)

    print("KERNEL_OK")
</pallas_src>

<mosaic_0001>
module attributes {stable_mosaic.version = 11 : i64} {
  func.func @_input_proj_kernel(%arg0: i32, %arg1: memref<64x16xf32, #tpu.memory_space<vmem>>, %arg2: memref<16x128xf32, #tpu.memory_space<vmem>>, %arg3: memref<1x128xf32, #tpu.memory_space<vmem>>, %arg4: memref<64x128xf32, #tpu.memory_space<vmem>>) attributes {dimension_semantics = [#tpu.dimension_semantics<parallel>], iteration_bounds = array<i64: 1>, scalar_prefetch = 0 : i64, scratch_operands = 0 : i64, tpu.core_type = #tpu.core_type<tc>, window_params = [{transform_indices = @transform_0, window_bounds = array<i64: 64, 16>}, {pipeline_mode = #tpu.pipeline_mode<synchronous>, transform_indices = @transform_1, window_bounds = array<i64: 16, 128>}, {pipeline_mode = #tpu.pipeline_mode<synchronous>, transform_indices = @transform_2, window_bounds = array<i64: 1, 128>}, {transform_indices = @transform_3, window_bounds = array<i64: 64, 128>}]} {
    %c0 = arith.constant 0 : index
    %c0_0 = arith.constant 0 : index
    %0 = vector.load %arg1[%c0, %c0_0] : memref<64x16xf32, #tpu.memory_space<vmem>>, vector<64x16xf32>
    %c0_1 = arith.constant 0 : index
    %c0_2 = arith.constant 0 : index
    %1 = vector.load %arg2[%c0_1, %c0_2] : memref<16x128xf32, #tpu.memory_space<vmem>>, vector<16x128xf32>
    %cst = arith.constant dense<0.000000e+00> : vector<64x128xf32>
    %2 = tpu.matmul %0, %1, %cst {dimension_numbers = #tpu.dot_dimension_numbers<[1], [0], [0], [1], [0, 0, 1, 1], [], []>} : vector<64x16xf32>, vector<16x128xf32>, vector<64x128xf32> -> vector<64x128xf32>
    %c0_3 = arith.constant 0 : index
    %c0_4 = arith.constant 0 : index
    %3 = vector.load %arg3[%c0_3, %c0_4] : memref<1x128xf32, #tpu.memory_space<vmem>>, vector<1x128xf32>
    %4 = vector.broadcast %3 : vector<1x128xf32> to vector<64x128xf32>
    %5 = arith.addf %2, %4 : vector<64x128xf32>
    %c0_5 = arith.constant 0 : index
    %c0_6 = arith.constant 0 : index
    %6 = vector.load %arg4[%c0_5, %c0_6] : memref<64x128xf32, #tpu.memory_space<vmem>>, vector<64x128xf32>
    tpu.vector_store %arg4[%c0_5, %c0_6], %5 {strides = array<i32>} : memref<64x128xf32, #tpu.memory_space<vmem>>, vector<64x128xf32>,
    return
  }
  func.func @transform_0(%arg0: i32) -> (i32, i32) {
    %c0_i32 = arith.constant 0 : i32
    %c0_i32_0 = arith.constant 0 : i32
    return %arg0, %c0_i32 : i32, i32
  }
  func.func @transform_1(%arg0: i32) -> (i32, i32) {
    %c0_i32 = arith.constant 0 : i32
    %c0_i32_0 = arith.constant 0 : i32
    %c0_i32_1 = arith.constant 0 : i32
    return %c0_i32, %c0_i32_0 : i32, i32
  }
  func.func @transform_2(%arg0: i32) -> (i32, i32) {
    %c0_i32 = arith.constant 0 : i32
    %c0_i32_0 = arith.constant 0 : i32
    %c0_i32_1 = arith.constant 0 : i32
    return %c0_i32, %c0_i32_0 : i32, i32
  }
  func.func @transform_3(%arg0: i32) -> (i32, i32) {
    %c0_i32 = arith.constant 0 : i32
    %c0_i32_0 = arith.constant 0 : i32
    return %arg0, %c0_i32 : i32, i32
  }
}

module attributes {stable_mosaic.version = 11 : i64} {
  func.func @_lstm_recurrence_kernel(%arg0: i32, %arg1: memref<8x8x128xf32, #tpu.memory_space<vmem>>, %arg2: memref<32x128xf32, #tpu.memory_space<vmem>>, %arg3: memref<8x8x32xf32, #tpu.memory_space<vmem>>, %arg4: memref<8x32xf32, #tpu.memory_space<vmem>>, %arg5: memref<8x32xf32, #tpu.memory_space<vmem>>, %arg6: memref<8x32xf32, #tpu.memory_space<vmem>>, %arg7: memref<8x32xf32, #tpu.memory_space<vmem>>) attributes {dimension_semantics = [#tpu.dimension_semantics<arbitrary>], iteration_bounds = array<i64: 1>, scalar_prefetch = 0 : i64, scratch_operands = 2 : i64, tpu.core_type = #tpu.core_type<tc>, window_params = [{transform_indices = @transform_0, window_bounds = array<i64: 8, 8, 128>}, {pipeline_mode = #tpu.pipeline_mode<synchronous>, transform_indices = @transform_1, window_bounds = array<i64: 32, 128>}, {transform_indices = @transform_2, window_bounds = array<i64: 8, 8, 32>}, {pipeline_mode = #tpu.pipeline_mode<synchronous>, transform_indices = @transform_3, window_bounds = array<i64: 8, 32>}, {pipeline_mode = #tpu.pipeline_mode<synchronous>, transform_indices = @transform_4, window_bounds = array<i64: 8, 32>}]} {
    %c0_i32 = arith.constant 0 : i32
    %0 = arith.cmpi eq, %arg0, %c0_i32 : i32
    %1 = arith.extui %0 : i1 to i32
    %c0_i32_0 = arith.constant 0 : i32
    %2 = arith.cmpi ne, %1, %c0_i32_0 : i32
    scf.if %2 {
      %cst_90 = arith.constant 0.000000e+00 : f32
      %290 = vector.broadcast %cst_90 : f32 to vector<8x32xf32>
      %c0_91 = arith.constant 0 : index
      %c0_92 = arith.constant 0 : index
      %291 = vector.load %arg6[%c0_91, %c0_92] : memref<8x32xf32, #tpu.memory_space<vmem>>, vector<8x32xf32>
      tpu.vector_store %arg6[%c0_91, %c0_92], %290 {strides = array<i32>} : memref<8x32xf32, #tpu.memory_space<vmem>>, vector<8x32xf32>,
      %cst_93 = arith.constant 0.000000e+00 : f32
      %292 = vector.broadcast %cst_93 : f32 to vector<8x32xf32>
      %c0_94 = arith.constant 0 : index
      %c0_95 = arith.constant 0 : index
      %293 = vector.load %arg7[%c0_94, %c0_95] : memref<8x32xf32, #tpu.memory_space<vmem>>, vector<8x32xf32>
      tpu.vector_store %arg7[%c0_94, %c0_95], %292 {strides = array<i32>} : memref<8x32xf32, #tpu.memory_space<vmem>>, vector<8x32xf32>,
    } else {
    }
    %c0 = arith.constant 0 : index
    %c0_1 = arith.constant 0 : index
    %3 = vector.load %arg6[%c0, %c0_1] : memref<8x32xf32, #tpu.memory_space<vmem>>, vector<8x32xf32>
    %c0_2 = arith.constant 0 : index
    %c0_3 = arith.constant 0 : index
    %4 = vector.load %arg7[%c0_2, %c0_3] : memref<8x32xf32, #tpu.memory_space<vmem>>, vector<8x32xf32>
    %c0_i32_4 = arith.constant 0 : i32
    %5 = arith.index_cast %c0_i32_4 : i32 to index
    %c0_5 = arith.constant 0 : index
    %c0_6 = arith.constant 0 : index
    %6 = vector.load %arg1[%5, %c0_5, %c0_6] : memref<8x8x128xf32, #tpu.memory_space<vmem>>, vector<1x8x128xf32>
    %7 = vector.shape_cast %6 : vector<1x8x128xf32> to vector<8x128xf32>
    %c0_7 = arith.constant 0 : index
    %c0_8 = arith.constant 0 : index
    %8 = vector.load %arg2[%c0_7, %c0_8] : memref<32x128xf32, #tpu.memory_space<vmem>>, vector<32x128xf32>
    %cst = arith.constant dense<0.000000e+00> : vector<8x128xf32>
    %9 = tpu.matmul %3, %8, %cst {dimension_numbers = #tpu.dot_dimension_numbers<[1], [0], [0], [1], [0, 0, 1, 1], [], []>} : vector<8x32xf32>, vector<32x128xf32>, vector<8x128xf32> -> vector<8x128xf32>
    %10 = arith.addf %7, %9 : vector<8x128xf32>
    %11 = vector.extract_strided_slice %10 {offsets = [0, 0], sizes = [8, 32], strides = [1, 1]} : vector<8x128xf32> to vector<8x32xf32>
    %12 = arith.negf %11 : vector<8x32xf32>
    %13 = math.exp %12 : vector<8x32xf32>
    %cst_9 = arith.constant 1.000000e+00 : f32
    %14 = vector.broadcast %cst_9 : f32 to vector<8x32xf32>
    %15 = arith.addf %14, %13 : vector<8x32xf32>
    %16 = arith.divf %14, %15 : vector<8x32xf32>
    %17 = vector.extract_strided_slice %10 {offsets = [0, 32], sizes = [8, 32], strides = [1, 1]} : vector<8x128xf32> to vector<8x32xf32>
    %18 = arith.negf %17 : vector<8x32xf32>
    %19 = math.exp %18 : vector<8x32xf32>
    %cst_10 = arith.constant 1.000000e+00 : f32
    %20 = vector.broadcast %cst_10 : f32 to vector<8x32xf32>
    %21 = arith.addf %20, %19 : vector<8x32xf32>
    %22 = arith.divf %20, %21 : vector<8x32xf32>
    %23 = vector.extract_strided_slice %10 {offsets = [0, 64], sizes = [8, 32], strides = [1, 1]} : vector<8x128xf32> to vector<8x32xf32>
    %24 = math.tanh %23 : vector<8x32xf32>
    %25 = vector.extract_strided_slice %10 {offsets = [0, 96], sizes = [8, 32], strides = [1, 1]} : vector<8x128xf32> to vector<8x32xf32>
    %26 = arith.negf %25 : vector<8x32xf32>
    %27 = math.exp %26 : vector<8x32xf32>
    %cst_11 = arith.constant 1.000000e+00 : f32
    %28 = vector.broadcast %cst_11 : f32 to vector<8x32xf32>
    %29 = arith.addf %28, %27 : vector<8x32xf32>
    %30 = arith.divf %28, %29 : vector<8x32xf32>
    %31 = arith.mulf %22, %4 : vector<8x32xf32>
    %32 = arith.mulf %16, %24 : vector<8x32xf32>
    %33 = arith.addf %31, %32 : vector<8x32xf32>
    %34 = math.tanh %33 : vector<8x32xf32>
    %35 = arith.mulf %30, %34 : vector<8x32xf32>
    %36 = arith.index_cast %c0_i32_4 : i32 to index
    %c0_12 = arith.constant 0 : index
    %c0_13 = arith.constant 0 : index
    %37 = vector.load %arg3[%36, %c0_12, %c0_13] : memref<8x8x32xf32, #tpu.memory_space<vmem>>, vector<1x8x32xf32>
    %38 = vector.shape_cast %37 : vector<1x8x32xf32> to vector<8x32xf32>
    %39 = vector.shape_cast %35 : vector<8x32xf32> to vector<1x8x32xf32>
    tpu.vector_store %arg3[%36, %c0_12, %c0_13], %39 {strides = array<i32>} : memref<8x8x32xf32, #tpu.memory_space<vmem>>, vector<1x8x32xf32>,
    %c1_i32 = arith.constant 1 : i32
    %40 = arith.index_cast %c1_i32 : i32 to index
    %c0_14 = arith.constant 0 : index
    %c0_15 = arith.constant 0 : index
    %41 = vector.load %arg1[%40, %c0_14, %c0_15] : memref<8x8x128xf32, #tpu.memory_space<vmem>>, vector<1x8x128xf32>
    %42 = vector.shape_cast %41 : vector<1x8x128xf32> to vector<8x128xf32>
    %c0_16 = arith.constant 0 : index
    %c0_17 = arith.constant 0 : index
    %43 = vector.load %arg2[%c0_16, %c0_17] : memref<32x128xf32, #tpu.memory_space<vmem>>, vector<32x128xf32>
    %cst_18 = arith.constant dense<0.000000e+00> : vector<8x128xf32>
    %44 = tpu.matmul %35, %43, %cst_18 {dimension_numbers = #tpu.dot_dimension_numbers<[1], [0], [0], [1], [0, 0, 1, 1], [], []>} : vector<8x32xf32>, vector<32x128xf32>, vector<8x128xf32> -> vector<8x128xf32>
    %45 = arith.addf %42, %44 : vector<8x128xf32>
    %46 = vector.extract_strided_slice %45 {offsets = [0, 0], sizes = [8, 32], strides = [1, 1]} : vector<8x128xf32> to vector<8x32xf32>
    %47 = arith.negf %46 : vector<8x32xf32>
    %48 = math.exp %47 : vector<8x32xf32>
    %cst_19 = arith.constant 1.000000e+00 : f32
    %49 = vector.broadcast %cst_19 : f32 to vector<8x32xf32>
    %50 = arith.addf %49, %48 : vector<8x32xf32>
    %51 = arith.divf %49, %50 : vector<8x32xf32>
    %52 = vector.extract_strided_slice %45 {offsets = [0, 32], sizes = [8, 32], strides = [1, 1]} : vector<8x128xf32> to vector<8x32xf32>
    %53 = arith.negf %52 : vector<8x32xf32>
    %54 = math.exp %53 : vector<8x32xf32>
    %cst_20 = arith.constant 1.000000e+00 : f32
    %55 = vector.broadcast %cst_20 : f32 to vector<8x32xf32>
    %56 = arith.addf %55, %54 : vector<8x32xf32>
    %57 = arith.divf %55, %56 : vector<8x32xf32>
    %58 = vector.extract_strided_slice %45 {offsets = [0, 64], sizes = [8, 32], strides = [1, 1]} : vector<8x128xf32> to vector<8x32xf32>
    %59 = math.tanh %58 : vector<8x32xf32>
    %60 = vector.extract_strided_slice %45 {offsets = [0, 96], sizes = [8, 32], strides = [1, 1]} : vector<8x128xf32> to vector<8x32xf32>
    %61 = arith.negf %60 : vector<8x32xf32>
    %62 = math.exp %61 : vector<8x32xf32>
    %cst_21 = arith.constant 1.000000e+00 : f32
    %63 = vector.broadcast %cst_21 : f32 to vector<8x32xf32>
    %64 = arith.addf %63, %62 : vector<8x32xf32>
    %65 = arith.divf %63, %64 : vector<8x32xf32>
    %66 = arith.mulf %57, %33 : vector<8x32xf32>
    %67 = arith.mulf %51, %59 : vector<8x32xf32>
    %68 = arith.addf %66, %67 : vector<8x32xf32>
    %69 = math.tanh %68 : vector<8x32xf32>
    %70 = arith.mulf %65, %69 : vector<8x32xf32>
    %71 = arith.index_cast %c1_i32 : i32 to index
    %c0_22 = arith.constant 0 : index
    %c0_23 = arith.constant 0 : index
    %72 = vector.load %arg3[%71, %c0_22, %c0_23] : memref<8x8x32xf32, #tpu.memory_space<vmem>>, vector<1x8x32xf32>
    %73 = vector.shape_cast %72 : vector<1x8x32xf32> to vector<8x32xf32>
    %74 = vector.shape_cast %70 : vector<8x32xf32> to vector<1x8x32xf32>
    tpu.vector_store %arg3[%71, %c0_22, %c0_23], %74 {strides = array<i32>} : memref<8x8x32xf32, #tpu.memory_space<vmem>>, vector<1x8x32xf32>,
    %c2_i32 = arith.constant 2 : i32
    %75 = arith.index_cast %c2_i32 : i32 to index
    %c0_24 = arith.constant 0 : index
    %c0_25 = arith.constant 0 : index
    %76 = vector.load %arg1[%75, %c0_24, %c0_25] : memref<8x8x128xf32, #tpu.memory_space<vmem>>, vector<1x8x128xf32>
    %77 = vector.shape_cast %76 : vector<1x8x128xf32> to vector<8x128xf32>
    %c0_26 = arith.constant 0 : index
    %c0_27 = arith.constant 0 : index
    %78 = vector.load %arg2[%c0_26, %c0_27] : memref<32x128xf32, #tpu.memory_space<vmem>>, vector<32x128xf32>
    %cst_28 = arith.constant dense<0.000000e+00> : vector<8x128xf32>
    %79 = tpu.matmul %70, %78, %cst_28 {dimension_numbers = #tpu.dot_dimension_numbers<[1], [0], [0], [1], [0, 0, 1, 1], [], []>} : vector<8x32xf32>, vector<32x128xf32>, vector<8x128xf32> -> vector<8x128xf32>
    %80 = arith.addf %77, %79 : vector<8x128xf32>
    %81 = vector.extract_strided_slice %80 {offsets = [0, 0], sizes = [8, 32], strides = [1, 1]} : vector<8x128xf32> to vector<8x32xf32>
    %82 = arith.negf %81 : vector<8x32xf32>
    %83 = math.exp %82 : vector<8x32xf32>
    %cst_29 = arith.constant 1.000000e+00 : f32
    %84 = vector.broadcast %cst_29 : f32 to vector<8x32xf32>
    %85 = arith.addf %84, %83 : vector<8x32xf32>
    %86 = arith.divf %84, %85 : vector<8x32xf32>
    %87 = vector.extract_strided_slice %80 {offsets = [0, 32], sizes = [8, 32], strides = [1, 1]} : vector<8x128xf32> to vector<8x32xf32>
    %88 = arith.negf %87 : vector<8x32xf32>
    %89 = math.exp %88 : vector<8x32xf32>
    %cst_30 = arith.constant 1.000000e+00 : f32
    %90 = vector.broadcast %cst_30 : f32 to vector<8x32xf32>
    %91 = arith.addf %90, %89 : vector<8x32xf32>
    %92 = arith.divf %90, %91 : vector<8x32xf32>
    %93 = vector.extract_strided_slice %80 {offsets = [0, 64], sizes = [8, 32], strides = [1, 1]} : vector<8x128xf32> to vector<8x32xf32>
    %94 = math.tanh %93 : vector<8x32xf32>
    %95 = vector.extract_strided_slice %80 {offsets = [0, 96], sizes = [8, 32], strides = [1, 1]} : vector<8x128xf32> to vector<8x32xf32>
    %96 = arith.negf %95 : vector<8x32xf32>
    %97 = math.exp %96 : vector<8x32xf32>
    %cst_31 = arith.constant 1.000000e+00 : f32
    %98 = vector.broadcast %cst_31 : f32 to vector<8x32xf32>
    %99 = arith.addf %98, %97 : vector<8x32xf32>
    %100 = arith.divf %98, %99 : vector<8x32xf32>
    %101 = arith.mulf %92, %68 : vector<8x32xf32>
    %102 = arith.mulf %86, %94 : vector<8x32xf32>
    %103 = arith.addf %101, %102 : vector<8x32xf32>
    %104 = math.tanh %103 : vector<8x32xf32>
    %105 = arith.mulf %100, %104 : vector<8x32xf32>
    %106 = arith.index_cast %c2_i32 : i32 to index
    %c0_32 = arith.constant 0 : index
    %c0_33 = arith.constant 0 : index
    %107 = vector.load %arg3[%106, %c0_32, %c0_33] : memref<8x8x32xf32, #tpu.memory_space<vmem>>, vector<1x8x32xf32>
    %108 = vector.shape_cast %107 : vector<1x8x32xf32> to vector<8x32xf32>
    %109 = vector.shape_cast %105 : vector<8x32xf32> to vector<1x8x32xf32>
    tpu.vector_store %arg3[%106, %c0_32, %c0_33], %109 {strides = array<i32>} : memref<8x8x32xf32, #tpu.memory_space<vmem>>, vector<1x8x32xf32>,
    %c3_i32 = arith.constant 3 : i32
    %110 = arith.index_cast %c3_i32 : i32 to index
    %c0_34 = arith.constant 0 : index
    %c0_35 = arith.constant 0 : index
    %111 = vector.load %arg1[%110, %c0_34, %c0_35] : memref<8x8x128xf32, #tpu.memory_space<vmem>>, vector<1x8x128xf32>
    %112 = vector.shape_cast %111 : vector<1x8x128xf32> to vector<8x128xf32>
    %c0_36 = arith.constant 0 : index
    %c0_37 = arith.constant 0 : index
    %113 = vector.load %arg2[%c0_36, %c0_37] : memref<32x128xf32, #tpu.memory_space<vmem>>, vector<32x128xf32>
    %cst_38 = arith.constant dense<0.000000e+00> : vector<8x128xf32>
    %114 = tpu.matmul %105, %113, %cst_38 {dimension_numbers = #tpu.dot_dimension_numbers<[1], [0], [0], [1], [0, 0, 1, 1], [], []>} : vector<8x32xf32>, vector<32x128xf32>, vector<8x128xf32> -> vector<8x128xf32>
    %115 = arith.addf %112, %114 : vector<8x128xf32>
    %116 = vector.extract_strided_slice %115 {offsets = [0, 0], sizes = [8, 32], strides = [1, 1]} : vector<8x128xf32> to vector<8x32xf32>
    %117 = arith.negf %116 : vector<8x32xf32>
    %118 = math.exp %117 : vector<8x32xf32>
    %cst_39 = arith.constant 1.000000e+00 : f32
    %119 = vector.broadcast %cst_39 : f32 to vector<8x32xf32>
    %120 = arith.addf %119, %118 : vector<8x32xf32>
    %121 = arith.divf %119, %120 : vector<8x32xf32>
    %122 = vector.extract_strided_slice %115 {offsets = [0, 32], sizes = [8, 32], strides = [1, 1]} : vector<8x128xf32> to vector<8x32xf32>
    %123 = arith.negf %122 : vector<8x32xf32>
    %124 = math.exp %123 : vector<8x32xf32>
    %cst_40 = arith.constant 1.000000e+00 : f32
    %125 = vector.broadcast %cst_40 : f32 to vector<8x32xf32>
    %126 = arith.addf %125, %124 : vector<8x32xf32>
    %127 = arith.divf %125, %126 : vector<8x32xf32>
    %128 = vector.extract_strided_slice %115 {offsets = [0, 64], sizes = [8, 32], strides = [1, 1]} : vector<8x128xf32> to vector<8x32xf32>
    %129 = math.tanh %128 : vector<8x32xf32>
    %130 = vector.extract_strided_slice %115 {offsets = [0, 96], sizes = [8, 32], strides = [1, 1]} : vector<8x128xf32> to vector<8x32xf32>
    %131 = arith.negf %130 : vector<8x32xf32>
    %132 = math.exp %131 : vector<8x32xf32>
    %cst_41 = arith.constant 1.000000e+00 : f32
    %133 = vector.broadcast %cst_41 : f32 to vector<8x32xf32>
    %134 = arith.addf %133, %132 : vector<8x32xf32>
    %135 = arith.divf %133, %134 : vector<8x32xf32>
    %136 = arith.mulf %127, %103 : vector<8x32xf32>
    %137 = arith.mulf %121, %129 : vector<8x32xf32>
    %138 = arith.addf %136, %137 : vector<8x32xf32>
    %139 = math.tanh %138 : vector<8x32xf32>
    %140 = arith.mulf %135, %139 : vector<8x32xf32>
    %141 = arith.index_cast %c3_i32 : i32 to index
    %c0_42 = arith.constant 0 : index
    %c0_43 = arith.constant 0 : index
    %142 = vector.load %arg3[%141, %c0_42, %c0_43] : memref<8x8x32xf32, #tpu.memory_space<vmem>>, vector<1x8x32xf32>
    %143 = vector.shape_cast %142 : vector<1x8x32xf32> to vector<8x32xf32>
    %144 = vector.shape_cast %140 : vector<8x32xf32> to vector<1x8x32xf32>
    tpu.vector_store %arg3[%141, %c0_42, %c0_43], %144 {strides = array<i32>} : memref<8x8x32xf32, #tpu.memory_space<vmem>>, vector<1x8x32xf32>,
    %c4_i32 = arith.constant 4 : i32
    %145 = arith.index_cast %c4_i32 : i32 to index
    %c0_44 = arith.constant 0 : index
    %c0_45 = arith.constant 0 : index
    %146 = vector.load %arg1[%145, %c0_44, %c0_45] : memref<8x8x128xf32, #tpu.memory_space<vmem>>, vector<1x8x128xf32>
    %147 = vector.shape_cast %146 : vector<1x8x128xf32> to vector<8x128xf32>
    %c0_46 = arith.constant 0 : index
    %c0_47 = arith.constant 0 : index
    %148 = vector.load %arg2[%c0_46, %c0_47] : memref<32x128xf32, #tpu.memory_space<vmem>>, vector<32x128xf32>
    %cst_48 = arith.constant dense<0.000000e+00> : vector<8x128xf32>
    %149 = tpu.matmul %140, %148, %cst_48 {dimension_numbers = #tpu.dot_dimension_numbers<[1], [0], [0], [1], [0, 0, 1, 1], [], []>} : vector<8x32xf32>, vector<32x128xf32>, vector<8x128xf32> -> vector<8x128xf32>
    %150 = arith.addf %147, %149 : vector<8x128xf32>
    %151 = vector.extract_strided_slice %150 {offsets = [0, 0], sizes = [8, 32], strides = [1, 1]} : vector<8x128xf32> to vector<8x32xf32>
    %152 = arith.negf %151 : vector<8x32xf32>
    %153 = math.exp %152 : vector<8x32xf32>
    %cst_49 = arith.constant 1.000000e+00 : f32
    %154 = vector.broadcast %cst_49 : f32 to vector<8x32xf32>
    %155 = arith.addf %154, %153 : vector<8x32xf32>
    %156 = arith.divf %154, %155 : vector<8x32xf32>
    %157 = vector.extract_strided_slice %150 {offsets = [0, 32], sizes = [8, 32], strides = [1, 1]} : vector<8x128xf32> to vector<8x32xf32>
    %158 = arith.negf %157 : vector<8x32xf32>
    %159 = math.exp %158 : vector<8x32xf32>
    %cst_50 = arith.constant 1.000000e+00 : f32
    %160 = vector.broadcast %cst_50 : f32 to vector<8x32xf32>
    %161 = arith.addf %160, %159 : vector<8x32xf32>
    %162 = arith.divf %160, %161 : vector<8x32xf32>
    %163 = vector.extract_strided_slice %150 {offsets = [0, 64], sizes = [8, 32], strides = [1, 1]} : vector<8x128xf32> to vector<8x32xf32>
    %164 = math.tanh %163 : vector<8x32xf32>
    %165 = vector.extract_strided_slice %150 {offsets = [0, 96], sizes = [8, 32], strides = [1, 1]} : vector<8x128xf32> to vector<8x32xf32>
    %166 = arith.negf %165 : vector<8x32xf32>
    %167 = math.exp %166 : vector<8x32xf32>
    %cst_51 = arith.constant 1.000000e+00 : f32
    %168 = vector.broadcast %cst_51 : f32 to vector<8x32xf32>
    %169 = arith.addf %168, %167 : vector<8x32xf32>
    %170 = arith.divf %168, %169 : vector<8x32xf32>
    %171 = arith.mulf %162, %138 : vector<8x32xf32>
    %172 = arith.mulf %156, %164 : vector<8x32xf32>
    %173 = arith.addf %171, %172 : vector<8x32xf32>
    %174 = math.tanh %173 : vector<8x32xf32>
    %175 = arith.mulf %170, %174 : vector<8x32xf32>
    %176 = arith.index_cast %c4_i32 : i32 to index
    %c0_52 = arith.constant 0 : index
    %c0_53 = arith.constant 0 : index
    %177 = vector.load %arg3[%176, %c0_52, %c0_53] : memref<8x8x32xf32, #tpu.memory_space<vmem>>, vector<1x8x32xf32>
    %178 = vector.shape_cast %177 : vector<1x8x32xf32> to vector<8x32xf32>
    %179 = vector.shape_cast %175 : vector<8x32xf32> to vector<1x8x32xf32>
    tpu.vector_store %arg3[%176, %c0_52, %c0_53], %179 {strides = array<i32>} : memref<8x8x32xf32, #tpu.memory_space<vmem>>, vector<1x8x32xf32>,
    %c5_i32 = arith.constant 5 : i32
    %180 = arith.index_cast %c5_i32 : i32 to index
    %c0_54 = arith.constant 0 : index
    %c0_55 = arith.constant 0 : index
    %181 = vector.load %arg1[%180, %c0_54, %c0_55] : memref<8x8x128xf32, #tpu.memory_space<vmem>>, vector<1x8x128xf32>
    %182 = vector.shape_cast %181 : vector<1x8x128xf32> to vector<8x128xf32>
    %c0_56 = arith.constant 0 : index
    %c0_57 = arith.constant 0 : index
    %183 = vector.load %arg2[%c0_56, %c0_57] : memref<32x128xf32, #tpu.memory_space<vmem>>, vector<32x128xf32>
    %cst_58 = arith.constant dense<0.000000e+00> : vector<8x128xf32>
    %184 = tpu.matmul %175, %183, %cst_58 {dimension_numbers = #tpu.dot_dimension_numbers<[1], [0], [0], [1], [0, 0, 1, 1], [], []>} : vector<8x32xf32>, vector<32x128xf32>, vector<8x128xf32> -> vector<8x128xf32>
    %185 = arith.addf %182, %184 : vector<8x128xf32>
    %186 = vector.extract_strided_slice %185 {offsets = [0, 0], sizes = [8, 32], strides = [1, 1]} : vector<8x128xf32> to vector<8x32xf32>
    %187 = arith.negf %186 : vector<8x32xf32>
    %188 = math.exp %187 : vector<8x32xf32>
    %cst_59 = arith.constant 1.000000e+00 : f32
    %189 = vector.broadcast %cst_59 : f32 to vector<8x32xf32>
    %190 = arith.addf %189, %188 : vector<8x32xf32>
    %191 = arith.divf %189, %190 : vector<8x32xf32>
    %192 = vector.extract_strided_slice %185 {offsets = [0, 32], sizes = [8, 32], strides = [1, 1]} : vector<8x128xf32> to vector<8x32xf32>
    %193 = arith.negf %192 : vector<8x32xf32>
    %194 = math.exp %193 : vector<8x32xf32>
    %cst_60 = arith.constant 1.000000e+00 : f32
    %195 = vector.broadcast %cst_60 : f32 to vector<8x32xf32>
    %196 = arith.addf %195, %194 : vector<8x32xf32>
    %197 = arith.divf %195, %196 : vector<8x32xf32>
    %198 = vector.extract_strided_slice %185 {offsets = [0, 64], sizes = [8, 32], strides = [1, 1]} : vector<8x128xf32> to vector<8x32xf32>
    %199 = math.tanh %198 : vector<8x32xf32>
    %200 = vector.extract_strided_slice %185 {offsets = [0, 96], sizes = [8, 32], strides = [1, 1]} : vector<8x128xf32> to vector<8x32xf32>
    %201 = arith.negf %200 : vector<8x32xf32>
    %202 = math.exp %201 : vector<8x32xf32>
    %cst_61 = arith.constant 1.000000e+00 : f32
    %203 = vector.broadcast %cst_61 : f32 to vector<8x32xf32>
    %204 = arith.addf %203, %202 : vector<8x32xf32>
    %205 = arith.divf %203, %204 : vector<8x32xf32>
    %206 = arith.mulf %197, %173 : vector<8x32xf32>
    %207 = arith.mulf %191, %199 : vector<8x32xf32>
    %208 = arith.addf %206, %207 : vector<8x32xf32>
    %209 = math.tanh %208 : vector<8x32xf32>
    %210 = arith.mulf %205, %209 : vector<8x32xf32>
    %211 = arith.index_cast %c5_i32 : i32 to index
    %c0_62 = arith.constant 0 : index
    %c0_63 = arith.constant 0 : index
    %212 = vector.load %arg3[%211, %c0_62, %c0_63] : memref<8x8x32xf32, #tpu.memory_space<vmem>>, vector<1x8x32xf32>
    %213 = vector.shape_cast %212 : vector<1x8x32xf32> to vector<8x32xf32>
    %214 = vector.shape_cast %210 : vector<8x32xf32> to vector<1x8x32xf32>
    tpu.vector_store %arg3[%211, %c0_62, %c0_63], %214 {strides = array<i32>} : memref<8x8x32xf32, #tpu.memory_space<vmem>>, vector<1x8x32xf32>,
    %c6_i32 = arith.constant 6 : i32
    %215 = arith.index_cast %c6_i32 : i32 to index
    %c0_64 = arith.constant 0 : index
    %c0_65 = arith.constant 0 : index
    %216 = vector.load %arg1[%215, %c0_64, %c0_65] : memref<8x8x128xf32, #tpu.memory_space<vmem>>, vector<1x8x128xf32>
    %217 = vector.shape_cast %216 : vector<1x8x128xf32> to vector<8x128xf32>
    %c0_66 = arith.constant 0 : index
    %c0_67 = arith.constant 0 : index
    %218 = vector.load %arg2[%c0_66, %c0_67] : memref<32x128xf32, #tpu.memory_space<vmem>>, vector<32x128xf32>
    %cst_68 = arith.constant dense<0.000000e+00> : vector<8x128xf32>
    %219 = tpu.matmul %210, %218, %cst_68 {dimension_numbers = #tpu.dot_dimension_numbers<[1], [0], [0], [1], [0, 0, 1, 1], [], []>} : vector<8x32xf32>, vector<32x128xf32>, vector<8x128xf32> -> vector<8x128xf32>
    %220 = arith.addf %217, %219 : vector<8x128xf32>
    %221 = vector.extract_strided_slice %220 {offsets = [0, 0], sizes = [8, 32], strides = [1, 1]} : vector<8x128xf32> to vector<8x32xf32>
    %222 = arith.negf %221 : vector<8x32xf32>
    %223 = math.exp %222 : vector<8x32xf32>
    %cst_69 = arith.constant 1.000000e+00 : f32
    %224 = vector.broadcast %cst_69 : f32 to vector<8x32xf32>
    %225 = arith.addf %224, %223 : vector<8x32xf32>
    %226 = arith.divf %224, %225 : vector<8x32xf32>
    %227 = vector.extract_strided_slice %220 {offsets = [0, 32], sizes = [8, 32], strides = [1, 1]} : vector<8x128xf32> to vector<8x32xf32>
    %228 = arith.negf %227 : vector<8x32xf32>
    %229 = math.exp %228 : vector<8x32xf32>
    %cst_70 = arith.constant 1.000000e+00 : f32
    %230 = vector.broadcast %cst_70 : f32 to vector<8x32xf32>
    %231 = arith.addf %230, %229 : vector<8x32xf32>
    %232 = arith.divf %230, %231 : vector<8x32xf32>
    %233 = vector.extract_strided_slice %220 {offsets = [0, 64], sizes = [8, 32], strides = [1, 1]} : vector<8x128xf32> to vector<8x32xf32>
    %234 = math.tanh %233 : vector<8x32xf32>
    %235 = vector.extract_strided_slice %220 {offsets = [0, 96], sizes = [8, 32], strides = [1, 1]} : vector<8x128xf32> to vector<8x32xf32>
    %236 = arith.negf %235 : vector<8x32xf32>
    %237 = math.exp %236 : vector<8x32xf32>
    %cst_71 = arith.constant 1.000000e+00 : f32
    %238 = vector.broadcast %cst_71 : f32 to vector<8x32xf32>
    %239 = arith.addf %238, %237 : vector<8x32xf32>
    %240 = arith.divf %238, %239 : vector<8x32xf32>
    %241 = arith.mulf %232, %208 : vector<8x32xf32>
    %242 = arith.mulf %226, %234 : vector<8x32xf32>
    %243 = arith.addf %241, %242 : vector<8x32xf32>
    %244 = math.tanh %243 : vector<8x32xf32>
    %245 = arith.mulf %240, %244 : vector<8x32xf32>
    %246 = arith.index_cast %c6_i32 : i32 to index
    %c0_72 = arith.constant 0 : index
    %c0_73 = arith.constant 0 : index
    %247 = vector.load %arg3[%246, %c0_72, %c0_73] : memref<8x8x32xf32, #tpu.memory_space<vmem>>, vector<1x8x32xf32>
    %248 = vector.shape_cast %247 : vector<1x8x32xf32> to vector<8x32xf32>
    %249 = vector.shape_cast %245 : vector<8x32xf32> to vector<1x8x32xf32>
    tpu.vector_store %arg3[%246, %c0_72, %c0_73], %249 {strides = array<i32>} : memref<8x8x32xf32, #tpu.memory_space<vmem>>, vector<1x8x32xf32>,
    %c7_i32 = arith.constant 7 : i32
    %250 = arith.index_cast %c7_i32 : i32 to index
    %c0_74 = arith.constant 0 : index
    %c0_75 = arith.constant 0 : index
    %251 = vector.load %arg1[%250, %c0_74, %c0_75] : memref<8x8x128xf32, #tpu.memory_space<vmem>>, vector<1x8x128xf32>
    %252 = vector.shape_cast %251 : vector<1x8x128xf32> to vector<8x128xf32>
    %c0_76 = arith.constant 0 : index
    %c0_77 = arith.constant 0 : index
    %253 = vector.load %arg2[%c0_76, %c0_77] : memref<32x128xf32, #tpu.memory_space<vmem>>, vector<32x128xf32>
    %cst_78 = arith.constant dense<0.000000e+00> : vector<8x128xf32>
    %254 = tpu.matmul %245, %253, %cst_78 {dimension_numbers = #tpu.dot_dimension_numbers<[1], [0], [0], [1], [0, 0, 1, 1], [], []>} : vector<8x32xf32>, vector<32x128xf32>, vector<8x128xf32> -> vector<8x128xf32>
    %255 = arith.addf %252, %254 : vector<8x128xf32>
    %256 = vector.extract_strided_slice %255 {offsets = [0, 0], sizes = [8, 32], strides = [1, 1]} : vector<8x128xf32> to vector<8x32xf32>
    %257 = arith.negf %256 : vector<8x32xf32>
    %258 = math.exp %257 : vector<8x32xf32>
    %cst_79 = arith.constant 1.000000e+00 : f32
    %259 = vector.broadcast %cst_79 : f32 to vector<8x32xf32>
    %260 = arith.addf %259, %258 : vector<8x32xf32>
    %261 = arith.divf %259, %260 : vector<8x32xf32>
    %262 = vector.extract_strided_slice %255 {offsets = [0, 32], sizes = [8, 32], strides = [1, 1]} : vector<8x128xf32> to vector<8x32xf32>
    %263 = arith.negf %262 : vector<8x32xf32>
    %264 = math.exp %263 : vector<8x32xf32>
    %cst_80 = arith.constant 1.000000e+00 : f32
    %265 = vector.broadcast %cst_80 : f32 to vector<8x32xf32>
    %266 = arith.addf %265, %264 : vector<8x32xf32>
    %267 = arith.divf %265, %266 : vector<8x32xf32>
    %268 = vector.extract_strided_slice %255 {offsets = [0, 64], sizes = [8, 32], strides = [1, 1]} : vector<8x128xf32> to vector<8x32xf32>
    %269 = math.tanh %268 : vector<8x32xf32>
    %270 = vector.extract_strided_slice %255 {offsets = [0, 96], sizes = [8, 32], strides = [1, 1]} : vector<8x128xf32> to vector<8x32xf32>
    %271 = arith.negf %270 : vector<8x32xf32>
    %272 = math.exp %271 : vector<8x32xf32>
    %cst_81 = arith.constant 1.000000e+00 : f32
    %273 = vector.broadcast %cst_81 : f32 to vector<8x32xf32>
    %274 = arith.addf %273, %272 : vector<8x32xf32>
    %275 = arith.divf %273, %274 : vector<8x32xf32>
    %276 = arith.mulf %267, %243 : vector<8x32xf32>
    %277 = arith.mulf %261, %269 : vector<8x32xf32>
    %278 = arith.addf %276, %277 : vector<8x32xf32>
    %279 = math.tanh %278 : vector<8x32xf32>
    %280 = arith.mulf %275, %279 : vector<8x32xf32>
    %281 = arith.index_cast %c7_i32 : i32 to index
    %c0_82 = arith.constant 0 : index
    %c0_83 = arith.constant 0 : index
    %282 = vector.load %arg3[%281, %c0_82, %c0_83] : memref<8x8x32xf32, #tpu.memory_space<vmem>>, vector<1x8x32xf32>
    %283 = vector.shape_cast %282 : vector<1x8x32xf32> to vector<8x32xf32>
    %284 = vector.shape_cast %280 : vector<8x32xf32> to vector<1x8x32xf32>
    tpu.vector_store %arg3[%281, %c0_82, %c0_83], %284 {strides = array<i32>} : memref<8x8x32xf32, #tpu.memory_space<vmem>>, vector<1x8x32xf32>,
    %c8_i32 = arith.constant 8 : i32
    %c0_84 = arith.constant 0 : index
    %c0_85 = arith.constant 0 : index
    %285 = vector.load %arg6[%c0_84, %c0_85] : memref<8x32xf32, #tpu.memory_space<vmem>>, vector<8x32xf32>
    tpu.vector_store %arg6[%c0_84, %c0_85], %280 {strides = array<i32>} : memref<8x32xf32, #tpu.memory_space<vmem>>, vector<8x32xf32>,
    %c0_86 = arith.constant 0 : index
    %c0_87 = arith.constant 0 : index
    %286 = vector.load %arg7[%c0_86, %c0_87] : memref<8x32xf32, #tpu.memory_space<vmem>>, vector<8x32xf32>
    tpu.vector_store %arg7[%c0_86, %c0_87], %278 {strides = array<i32>} : memref<8x32xf32, #tpu.memory_space<vmem>>, vector<8x32xf32>,
    %c0_i32_88 = arith.constant 0 : i32
    %287 = arith.cmpi eq, %arg0, %c0_i32_88 : i32
    %288 = arith.extui %287 : i1 to i32
    %c0_i32_89 = arith.constant 0 : i32
    %289 = arith.cmpi ne, %288, %c0_i32_89 : i32
    scf.if %289 {
      %c0_90 = arith.constant 0 : index
      %c0_91 = arith.constant 0 : index
      %290 = vector.load %arg4[%c0_90, %c0_91] : memref<8x32xf32, #tpu.memory_space<vmem>>, vector<8x32xf32>
      tpu.vector_store %arg4[%c0_90, %c0_91], %280 {strides = array<i32>} : memref<8x32xf32, #tpu.memory_space<vmem>>, vector<8x32xf32>,
      %c0_92 = arith.constant 0 : index
      %c0_93 = arith.constant 0 : index
      %291 = vector.load %arg5[%c0_92, %c0_93] : memref<8x32xf32, #tpu.memory_space<vmem>>, vector<8x32xf32>
      tpu.vector_store %arg5[%c0_92, %c0_93], %278 {strides = array<i32>} : memref<8x32xf32, #tpu.memory_space<vmem>>, vector<8x32xf32>,
    } else {
    }
    return
  }
  func.func @transform_0(%arg0: i32) -> (i32, i32, i32) {
    %c0_i32 = arith.constant 0 : i32
    %c0_i32_0 = arith.constant 0 : i32
    %c0_i32_1 = arith.constant 0 : i32
    return %arg0, %c0_i32, %c0_i32_0 : i32, i32, i32
  }
  func.func @transform_1(%arg0: i32) -> (i32, i32) {
    %c0_i32 = arith.constant 0 : i32
    %c0_i32_0 = arith.constant 0 : i32
    %c0_i32_1 = arith.constant 0 : i32
    return %c0_i32, %c0_i32_0 : i32, i32
  }
  func.func @transform_2(%arg0: i32) -> (i32, i32, i32) {
    %c0_i32 = arith.constant 0 : i32
    %c0_i32_0 = arith.constant 0 : i32
    %c0_i32_1 = arith.constant 0 : i32
    return %arg0, %c0_i32, %c0_i32_0 : i32, i32, i32
  }
  func.func @transform_3(%arg0: i32) -> (i32, i32) {
    %c0_i32 = arith.constant 0 : i32
    %c0_i32_0 = arith.constant 0 : i32
    %c0_i32_1 = arith.constant 0 : i32
    return %c0_i32, %c0_i32_0 : i32, i32
  }
  func.func @transform_4(%arg0: i32) -> (i32, i32) {
    %c0_i32 = arith.constant 0 : i32
    %c0_i32_0 = arith.constant 0 : i32
    %c0_i32_1 = arith.constant 0 : i32
    return %c0_i32, %c0_i32_0 : i32, i32
  }
}

module attributes {stable_mosaic.version = 11 : i64} {
  func.func @_input_proj_kernel(%arg0: i32, %arg1: memref<64x32xf32, #tpu.memory_space<vmem>>, %arg2: memref<32x128xf32, #tpu.memory_space<vmem>>, %arg3: memref<1x128xf32, #tpu.memory_space<vmem>>, %arg4: memref<64x128xf32, #tpu.memory_space<vmem>>) attributes {dimension_semantics = [#tpu.dimension_semantics<parallel>], iteration_bounds = array<i64: 1>, scalar_prefetch = 0 : i64, scratch_operands = 0 : i64, tpu.core_type = #tpu.core_type<tc>, window_params = [{transform_indices = @transform_0, window_bounds = array<i64: 64, 32>}, {pipeline_mode = #tpu.pipeline_mode<synchronous>, transform_indices = @transform_1, window_bounds = array<i64: 32, 128>}, {pipeline_mode = #tpu.pipeline_mode<synchronous>, transform_indices = @transform_2, window_bounds = array<i64: 1, 128>}, {transform_indices = @transform_3, window_bounds = array<i64: 64, 128>}]} {
    %c0 = arith.constant 0 : index
    %c0_0 = arith.constant 0 : index
    %0 = vector.load %arg1[%c0, %c0_0] : memref<64x32xf32, #tpu.memory_space<vmem>>, vector<64x32xf32>
    %c0_1 = arith.constant 0 : index
    %c0_2 = arith.constant 0 : index
    %1 = vector.load %arg2[%c0_1, %c0_2] : memref<32x128xf32, #tpu.memory_space<vmem>>, vector<32x128xf32>
    %cst = arith.constant dense<0.000000e+00> : vector<64x128xf32>
    %2 = tpu.matmul %0, %1, %cst {dimension_numbers = #tpu.dot_dimension_numbers<[1], [0], [0], [1], [0, 0, 1, 1], [], []>} : vector<64x32xf32>, vector<32x128xf32>, vector<64x128xf32> -> vector<64x128xf32>
    %c0_3 = arith.constant 0 : index
    %c0_4 = arith.constant 0 : index
    %3 = vector.load %arg3[%c0_3, %c0_4] : memref<1x128xf32, #tpu.memory_space<vmem>>, vector<1x128xf32>
    %4 = vector.broadcast %3 : vector<1x128xf32> to vector<64x128xf32>
    %5 = arith.addf %2, %4 : vector<64x128xf32>
    %c0_5 = arith.constant 0 : index
    %c0_6 = arith.constant 0 : index
    %6 = vector.load %arg4[%c0_5, %c0_6] : memref<64x128xf32, #tpu.memory_space<vmem>>, vector<64x128xf32>
    tpu.vector_store %arg4[%c0_5, %c0_6], %5 {strides = array<i32>} : memref<64x128xf32, #tpu.memory_space<vmem>>, vector<64x128xf32>,
    return
  }
  func.func @transform_0(%arg0: i32) -> (i32, i32) {
    %c0_i32 = arith.constant 0 : i32
    %c0_i32_0 = arith.constant 0 : i32
    return %arg0, %c0_i32 : i32, i32
  }
  func.func @transform_1(%arg0: i32) -> (i32, i32) {
    %c0_i32 = arith.constant 0 : i32
    %c0_i32_0 = arith.constant 0 : i32
    %c0_i32_1 = arith.constant 0 : i32
    return %c0_i32, %c0_i32_0 : i32, i32
  }
  func.func @transform_2(%arg0: i32) -> (i32, i32) {
    %c0_i32 = arith.constant 0 : i32
    %c0_i32_0 = arith.constant 0 : i32
    %c0_i32_1 = arith.constant 0 : i32
    return %c0_i32, %c0_i32_0 : i32, i32
  }
  func.func @transform_3(%arg0: i32) -> (i32, i32) {
    %c0_i32 = arith.constant 0 : i32
    %c0_i32_0 = arith.constant 0 : i32
    return %arg0, %c0_i32 : i32, i32
  }
}

module attributes {stable_mosaic.version = 11 : i64} {
  func.func @_lstm_recurrence_kernel(%arg0: i32, %arg1: memref<8x8x128xf32, #tpu.memory_space<vmem>>, %arg2: memref<32x128xf32, #tpu.memory_space<vmem>>, %arg3: memref<8x8x32xf32, #tpu.memory_space<vmem>>, %arg4: memref<8x32xf32, #tpu.memory_space<vmem>>, %arg5: memref<8x32xf32, #tpu.memory_space<vmem>>, %arg6: memref<8x32xf32, #tpu.memory_space<vmem>>, %arg7: memref<8x32xf32, #tpu.memory_space<vmem>>) attributes {dimension_semantics = [#tpu.dimension_semantics<arbitrary>], iteration_bounds = array<i64: 1>, scalar_prefetch = 0 : i64, scratch_operands = 2 : i64, tpu.core_type = #tpu.core_type<tc>, window_params = [{transform_indices = @transform_0, window_bounds = array<i64: 8, 8, 128>}, {pipeline_mode = #tpu.pipeline_mode<synchronous>, transform_indices = @transform_1, window_bounds = array<i64: 32, 128>}, {transform_indices = @transform_2, window_bounds = array<i64: 8, 8, 32>}, {pipeline_mode = #tpu.pipeline_mode<synchronous>, transform_indices = @transform_3, window_bounds = array<i64: 8, 32>}, {pipeline_mode = #tpu.pipeline_mode<synchronous>, transform_indices = @transform_4, window_bounds = array<i64: 8, 32>}]} {
    %c0_i32 = arith.constant 0 : i32
    %0 = arith.cmpi eq, %arg0, %c0_i32 : i32
    %1 = arith.extui %0 : i1 to i32
    %c0_i32_0 = arith.constant 0 : i32
    %2 = arith.cmpi ne, %1, %c0_i32_0 : i32
    scf.if %2 {
      %cst_90 = arith.constant 0.000000e+00 : f32
      %290 = vector.broadcast %cst_90 : f32 to vector<8x32xf32>
      %c0_91 = arith.constant 0 : index
      %c0_92 = arith.constant 0 : index
      %291 = vector.load %arg6[%c0_91, %c0_92] : memref<8x32xf32, #tpu.memory_space<vmem>>, vector<8x32xf32>
      tpu.vector_store %arg6[%c0_91, %c0_92], %290 {strides = array<i32>} : memref<8x32xf32, #tpu.memory_space<vmem>>, vector<8x32xf32>,
      %cst_93 = arith.constant 0.000000e+00 : f32
      %292 = vector.broadcast %cst_93 : f32 to vector<8x32xf32>
      %c0_94 = arith.constant 0 : index
      %c0_95 = arith.constant 0 : index
      %293 = vector.load %arg7[%c0_94, %c0_95] : memref<8x32xf32, #tpu.memory_space<vmem>>, vector<8x32xf32>
      tpu.vector_store %arg7[%c0_94, %c0_95], %292 {strides = array<i32>} : memref<8x32xf32, #tpu.memory_space<vmem>>, vector<8x32xf32>,
    } else {
    }
    %c0 = arith.constant 0 : index
    %c0_1 = arith.constant 0 : index
    %3 = vector.load %arg6[%c0, %c0_1] : memref<8x32xf32, #tpu.memory_space<vmem>>, vector<8x32xf32>
    %c0_2 = arith.constant 0 : index
    %c0_3 = arith.constant 0 : index
    %4 = vector.load %arg7[%c0_2, %c0_3] : memref<8x32xf32, #tpu.memory_space<vmem>>, vector<8x32xf32>
    %c0_i32_4 = arith.constant 0 : i32
    %5 = arith.index_cast %c0_i32_4 : i32 to index
    %c0_5 = arith.constant 0 : index
    %c0_6 = arith.constant 0 : index
    %6 = vector.load %arg1[%5, %c0_5, %c0_6] : memref<8x8x128xf32, #tpu.memory_space<vmem>>, vector<1x8x128xf32>
    %7 = vector.shape_cast %6 : vector<1x8x128xf32> to vector<8x128xf32>
    %c0_7 = arith.constant 0 : index
    %c0_8 = arith.constant 0 : index
    %8 = vector.load %arg2[%c0_7, %c0_8] : memref<32x128xf32, #tpu.memory_space<vmem>>, vector<32x128xf32>
    %cst = arith.constant dense<0.000000e+00> : vector<8x128xf32>
    %9 = tpu.matmul %3, %8, %cst {dimension_numbers = #tpu.dot_dimension_numbers<[1], [0], [0], [1], [0, 0, 1, 1], [], []>} : vector<8x32xf32>, vector<32x128xf32>, vector<8x128xf32> -> vector<8x128xf32>
    %10 = arith.addf %7, %9 : vector<8x128xf32>
    %11 = vector.extract_strided_slice %10 {offsets = [0, 0], sizes = [8, 32], strides = [1, 1]} : vector<8x128xf32> to vector<8x32xf32>
    %12 = arith.negf %11 : vector<8x32xf32>
    %13 = math.exp %12 : vector<8x32xf32>
    %cst_9 = arith.constant 1.000000e+00 : f32
    %14 = vector.broadcast %cst_9 : f32 to vector<8x32xf32>
    %15 = arith.addf %14, %13 : vector<8x32xf32>
    %16 = arith.divf %14, %15 : vector<8x32xf32>
    %17 = vector.extract_strided_slice %10 {offsets = [0, 32], sizes = [8, 32], strides = [1, 1]} : vector<8x128xf32> to vector<8x32xf32>
    %18 = arith.negf %17 : vector<8x32xf32>
    %19 = math.exp %18 : vector<8x32xf32>
    %cst_10 = arith.constant 1.000000e+00 : f32
    %20 = vector.broadcast %cst_10 : f32 to vector<8x32xf32>
    %21 = arith.addf %20, %19 : vector<8x32xf32>
    %22 = arith.divf %20, %21 : vector<8x32xf32>
    %23 = vector.extract_strided_slice %10 {offsets = [0, 64], sizes = [8, 32], strides = [1, 1]} : vector<8x128xf32> to vector<8x32xf32>
    %24 = math.tanh %23 : vector<8x32xf32>
    %25 = vector.extract_strided_slice %10 {offsets = [0, 96], sizes = [8, 32], strides = [1, 1]} : vector<8x128xf32> to vector<8x32xf32>
    %26 = arith.negf %25 : vector<8x32xf32>
    %27 = math.exp %26 : vector<8x32xf32>
    %cst_11 = arith.constant 1.000000e+00 : f32
    %28 = vector.broadcast %cst_11 : f32 to vector<8x32xf32>
    %29 = arith.addf %28, %27 : vector<8x32xf32>
    %30 = arith.divf %28, %29 : vector<8x32xf32>
    %31 = arith.mulf %22, %4 : vector<8x32xf32>
    %32 = arith.mulf %16, %24 : vector<8x32xf32>
    %33 = arith.addf %31, %32 : vector<8x32xf32>
    %34 = math.tanh %33 : vector<8x32xf32>
    %35 = arith.mulf %30, %34 : vector<8x32xf32>
    %36 = arith.index_cast %c0_i32_4 : i32 to index
    %c0_12 = arith.constant 0 : index
    %c0_13 = arith.constant 0 : index
    %37 = vector.load %arg3[%36, %c0_12, %c0_13] : memref<8x8x32xf32, #tpu.memory_space<vmem>>, vector<1x8x32xf32>
    %38 = vector.shape_cast %37 : vector<1x8x32xf32> to vector<8x32xf32>
    %39 = vector.shape_cast %35 : vector<8x32xf32> to vector<1x8x32xf32>
    tpu.vector_store %arg3[%36, %c0_12, %c0_13], %39 {strides = array<i32>} : memref<8x8x32xf32, #tpu.memory_space<vmem>>, vector<1x8x32xf32>,
    %c1_i32 = arith.constant 1 : i32
    %40 = arith.index_cast %c1_i32 : i32 to index
    %c0_14 = arith.constant 0 : index
    %c0_15 = arith.constant 0 : index
    %41 = vector.load %arg1[%40, %c0_14, %c0_15] : memref<8x8x128xf32, #tpu.memory_space<vmem>>, vector<1x8x128xf32>
    %42 = vector.shape_cast %41 : vector<1x8x128xf32> to vector<8x128xf32>
    %c0_16 = arith.constant 0 : index
    %c0_17 = arith.constant 0 : index
    %43 = vector.load %arg2[%c0_16, %c0_17] : memref<32x128xf32, #tpu.memory_space<vmem>>, vector<32x128xf32>
    %cst_18 = arith.constant dense<0.000000e+00> : vector<8x128xf32>
    %44 = tpu.matmul %35, %43, %cst_18 {dimension_numbers = #tpu.dot_dimension_numbers<[1], [0], [0], [1], [0, 0, 1, 1], [], []>} : vector<8x32xf32>, vector<32x128xf32>, vector<8x128xf32> -> vector<8x128xf32>
    %45 = arith.addf %42, %44 : vector<8x128xf32>
    %46 = vector.extract_strided_slice %45 {offsets = [0, 0], sizes = [8, 32], strides = [1, 1]} : vector<8x128xf32> to vector<8x32xf32>
    %47 = arith.negf %46 : vector<8x32xf32>
    %48 = math.exp %47 : vector<8x32xf32>
    %cst_19 = arith.constant 1.000000e+00 : f32
    %49 = vector.broadcast %cst_19 : f32 to vector<8x32xf32>
    %50 = arith.addf %49, %48 : vector<8x32xf32>
    %51 = arith.divf %49, %50 : vector<8x32xf32>
    %52 = vector.extract_strided_slice %45 {offsets = [0, 32], sizes = [8, 32], strides = [1, 1]} : vector<8x128xf32> to vector<8x32xf32>
    %53 = arith.negf %52 : vector<8x32xf32>
    %54 = math.exp %53 : vector<8x32xf32>
    %cst_20 = arith.constant 1.000000e+00 : f32
    %55 = vector.broadcast %cst_20 : f32 to vector<8x32xf32>
    %56 = arith.addf %55, %54 : vector<8x32xf32>
    %57 = arith.divf %55, %56 : vector<8x32xf32>
    %58 = vector.extract_strided_slice %45 {offsets = [0, 64], sizes = [8, 32], strides = [1, 1]} : vector<8x128xf32> to vector<8x32xf32>
    %59 = math.tanh %58 : vector<8x32xf32>
    %60 = vector.extract_strided_slice %45 {offsets = [0, 96], sizes = [8, 32], strides = [1, 1]} : vector<8x128xf32> to vector<8x32xf32>
    %61 = arith.negf %60 : vector<8x32xf32>
    %62 = math.exp %61 : vector<8x32xf32>
    %cst_21 = arith.constant 1.000000e+00 : f32
    %63 = vector.broadcast %cst_21 : f32 to vector<8x32xf32>
    %64 = arith.addf %63, %62 : vector<8x32xf32>
    %65 = arith.divf %63, %64 : vector<8x32xf32>
    %66 = arith.mulf %57, %33 : vector<8x32xf32>
    %67 = arith.mulf %51, %59 : vector<8x32xf32>
    %68 = arith.addf %66, %67 : vector<8x32xf32>
    %69 = math.tanh %68 : vector<8x32xf32>
    %70 = arith.mulf %65, %69 : vector<8x32xf32>
    %71 = arith.index_cast %c1_i32 : i32 to index
    %c0_22 = arith.constant 0 : index
    %c0_23 = arith.constant 0 : index
    %72 = vector.load %arg3[%71, %c0_22, %c0_23] : memref<8x8x32xf32, #tpu.memory_space<vmem>>, vector<1x8x32xf32>
    %73 = vector.shape_cast %72 : vector<1x8x32xf32> to vector<8x32xf32>
    %74 = vector.shape_cast %70 : vector<8x32xf32> to vector<1x8x32xf32>
    tpu.vector_store %arg3[%71, %c0_22, %c0_23], %74 {strides = array<i32>} : memref<8x8x32xf32, #tpu.memory_space<vmem>>, vector<1x8x32xf32>,
    %c2_i32 = arith.constant 2 : i32
    %75 = arith.index_cast %c2_i32 : i32 to index
    %c0_24 = arith.constant 0 : index
    %c0_25 = arith.constant 0 : index
    %76 = vector.load %arg1[%75, %c0_24, %c0_25] : memref<8x8x128xf32, #tpu.memory_space<vmem>>, vector<1x8x128xf32>
    %77 = vector.shape_cast %76 : vector<1x8x128xf32> to vector<8x128xf32>
    %c0_26 = arith.constant 0 : index
    %c0_27 = arith.constant 0 : index
    %78 = vector.load %arg2[%c0_26, %c0_27] : memref<32x128xf32, #tpu.memory_space<vmem>>, vector<32x128xf32>
    %cst_28 = arith.constant dense<0.000000e+00> : vector<8x128xf32>
    %79 = tpu.matmul %70, %78, %cst_28 {dimension_numbers = #tpu.dot_dimension_numbers<[1], [0], [0], [1], [0, 0, 1, 1], [], []>} : vector<8x32xf32>, vector<32x128xf32>, vector<8x128xf32> -> vector<8x128xf32>
    %80 = arith.addf %77, %79 : vector<8x128xf32>
    %81 = vector.extract_strided_slice %80 {offsets = [0, 0], sizes = [8, 32], strides = [1, 1]} : vector<8x128xf32> to vector<8x32xf32>
    %82 = arith.negf %81 : vector<8x32xf32>
    %83 = math.exp %82 : vector<8x32xf32>
    %cst_29 = arith.constant 1.000000e+00 : f32
    %84 = vector.broadcast %cst_29 : f32 to vector<8x32xf32>
    %85 = arith.addf %84, %83 : vector<8x32xf32>
    %86 = arith.divf %84, %85 : vector<8x32xf32>
    %87 = vector.extract_strided_slice %80 {offsets = [0, 32], sizes = [8, 32], strides = [1, 1]} : vector<8x128xf32> to vector<8x32xf32>
    %88 = arith.negf %87 : vector<8x32xf32>
    %89 = math.exp %88 : vector<8x32xf32>
    %cst_30 = arith.constant 1.000000e+00 : f32
    %90 = vector.broadcast %cst_30 : f32 to vector<8x32xf32>
    %91 = arith.addf %90, %89 : vector<8x32xf32>
    %92 = arith.divf %90, %91 : vector<8x32xf32>
    %93 = vector.extract_strided_slice %80 {offsets = [0, 64], sizes = [8, 32], strides = [1, 1]} : vector<8x128xf32> to vector<8x32xf32>
    %94 = math.tanh %93 : vector<8x32xf32>
    %95 = vector.extract_strided_slice %80 {offsets = [0, 96], sizes = [8, 32], strides = [1, 1]} : vector<8x128xf32> to vector<8x32xf32>
    %96 = arith.negf %95 : vector<8x32xf32>
    %97 = math.exp %96 : vector<8x32xf32>
    %cst_31 = arith.constant 1.000000e+00 : f32
    %98 = vector.broadcast %cst_31 : f32 to vector<8x32xf32>
    %99 = arith.addf %98, %97 : vector<8x32xf32>
    %100 = arith.divf %98, %99 : vector<8x32xf32>
    %101 = arith.mulf %92, %68 : vector<8x32xf32>
    %102 = arith.mulf %86, %94 : vector<8x32xf32>
    %103 = arith.addf %101, %102 : vector<8x32xf32>
    %104 = math.tanh %103 : vector<8x32xf32>
    %105 = arith.mulf %100, %104 : vector<8x32xf32>
    %106 = arith.index_cast %c2_i32 : i32 to index
    %c0_32 = arith.constant 0 : index
    %c0_33 = arith.constant 0 : index
    %107 = vector.load %arg3[%106, %c0_32, %c0_33] : memref<8x8x32xf32, #tpu.memory_space<vmem>>, vector<1x8x32xf32>
    %108 = vector.shape_cast %107 : vector<1x8x32xf32> to vector<8x32xf32>
    %109 = vector.shape_cast %105 : vector<8x32xf32> to vector<1x8x32xf32>
    tpu.vector_store %arg3[%106, %c0_32, %c0_33], %109 {strides = array<i32>} : memref<8x8x32xf32, #tpu.memory_space<vmem>>, vector<1x8x32xf32>,
    %c3_i32 = arith.constant 3 : i32
    %110 = arith.index_cast %c3_i32 : i32 to index
    %c0_34 = arith.constant 0 : index
    %c0_35 = arith.constant 0 : index
    %111 = vector.load %arg1[%110, %c0_34, %c0_35] : memref<8x8x128xf32, #tpu.memory_space<vmem>>, vector<1x8x128xf32>
    %112 = vector.shape_cast %111 : vector<1x8x128xf32> to vector<8x128xf32>
    %c0_36 = arith.constant 0 : index
    %c0_37 = arith.constant 0 : index
    %113 = vector.load %arg2[%c0_36, %c0_37] : memref<32x128xf32, #tpu.memory_space<vmem>>, vector<32x128xf32>
    %cst_38 = arith.constant dense<0.000000e+00> : vector<8x128xf32>
    %114 = tpu.matmul %105, %113, %cst_38 {dimension_numbers = #tpu.dot_dimension_numbers<[1], [0], [0], [1], [0, 0, 1, 1], [], []>} : vector<8x32xf32>, vector<32x128xf32>, vector<8x128xf32> -> vector<8x128xf32>
    %115 = arith.addf %112, %114 : vector<8x128xf32>
    %116 = vector.extract_strided_slice %115 {offsets = [0, 0], sizes = [8, 32], strides = [1, 1]} : vector<8x128xf32> to vector<8x32xf32>
    %117 = arith.negf %116 : vector<8x32xf32>
    %118 = math.exp %117 : vector<8x32xf32>
    %cst_39 = arith.constant 1.000000e+00 : f32
    %119 = vector.broadcast %cst_39 : f32 to vector<8x32xf32>
    %120 = arith.addf %119, %118 : vector<8x32xf32>
    %121 = arith.divf %119, %120 : vector<8x32xf32>
    %122 = vector.extract_strided_slice %115 {offsets = [0, 32], sizes = [8, 32], strides = [1, 1]} : vector<8x128xf32> to vector<8x32xf32>
    %123 = arith.negf %122 : vector<8x32xf32>
    %124 = math.exp %123 : vector<8x32xf32>
    %cst_40 = arith.constant 1.000000e+00 : f32
    %125 = vector.broadcast %cst_40 : f32 to vector<8x32xf32>
    %126 = arith.addf %125, %124 : vector<8x32xf32>
    %127 = arith.divf %125, %126 : vector<8x32xf32>
    %128 = vector.extract_strided_slice %115 {offsets = [0, 64], sizes = [8, 32], strides = [1, 1]} : vector<8x128xf32> to vector<8x32xf32>
    %129 = math.tanh %128 : vector<8x32xf32>
    %130 = vector.extract_strided_slice %115 {offsets = [0, 96], sizes = [8, 32], strides = [1, 1]} : vector<8x128xf32> to vector<8x32xf32>
    %131 = arith.negf %130 : vector<8x32xf32>
    %132 = math.exp %131 : vector<8x32xf32>
    %cst_41 = arith.constant 1.000000e+00 : f32
    %133 = vector.broadcast %cst_41 : f32 to vector<8x32xf32>
    %134 = arith.addf %133, %132 : vector<8x32xf32>
    %135 = arith.divf %133, %134 : vector<8x32xf32>
    %136 = arith.mulf %127, %103 : vector<8x32xf32>
    %137 = arith.mulf %121, %129 : vector<8x32xf32>
    %138 = arith.addf %136, %137 : vector<8x32xf32>
    %139 = math.tanh %138 : vector<8x32xf32>
    %140 = arith.mulf %135, %139 : vector<8x32xf32>
    %141 = arith.index_cast %c3_i32 : i32 to index
    %c0_42 = arith.constant 0 : index
    %c0_43 = arith.constant 0 : index
    %142 = vector.load %arg3[%141, %c0_42, %c0_43] : memref<8x8x32xf32, #tpu.memory_space<vmem>>, vector<1x8x32xf32>
    %143 = vector.shape_cast %142 : vector<1x8x32xf32> to vector<8x32xf32>
    %144 = vector.shape_cast %140 : vector<8x32xf32> to vector<1x8x32xf32>
    tpu.vector_store %arg3[%141, %c0_42, %c0_43], %144 {strides = array<i32>} : memref<8x8x32xf32, #tpu.memory_space<vmem>>, vector<1x8x32xf32>,
    %c4_i32 = arith.constant 4 : i32
    %145 = arith.index_cast %c4_i32 : i32 to index
    %c0_44 = arith.constant 0 : index
    %c0_45 = arith.constant 0 : index
    %146 = vector.load %arg1[%145, %c0_44, %c0_45] : memref<8x8x128xf32, #tpu.memory_space<vmem>>, vector<1x8x128xf32>
    %147 = vector.shape_cast %146 : vector<1x8x128xf32> to vector<8x128xf32>
    %c0_46 = arith.constant 0 : index
    %c0_47 = arith.constant 0 : index
    %148 = vector.load %arg2[%c0_46, %c0_47] : memref<32x128xf32, #tpu.memory_space<vmem>>, vector<32x128xf32>
    %cst_48 = arith.constant dense<0.000000e+00> : vector<8x128xf32>
    %149 = tpu.matmul %140, %148, %cst_48 {dimension_numbers = #tpu.dot_dimension_numbers<[1], [0], [0], [1], [0, 0, 1, 1], [], []>} : vector<8x32xf32>, vector<32x128xf32>, vector<8x128xf32> -> vector<8x128xf32>
    %150 = arith.addf %147, %149 : vector<8x128xf32>
    %151 = vector.extract_strided_slice %150 {offsets = [0, 0], sizes = [8, 32], strides = [1, 1]} : vector<8x128xf32> to vector<8x32xf32>
    %152 = arith.negf %151 : vector<8x32xf32>
    %153 = math.exp %152 : vector<8x32xf32>
    %cst_49 = arith.constant 1.000000e+00 : f32
    %154 = vector.broadcast %cst_49 : f32 to vector<8x32xf32>
    %155 = arith.addf %154, %153 : vector<8x32xf32>
    %156 = arith.divf %154, %155 : vector<8x32xf32>
    %157 = vector.extract_strided_slice %150 {offsets = [0, 32], sizes = [8, 32], strides = [1, 1]} : vector<8x128xf32> to vector<8x32xf32>
    %158 = arith.negf %157 : vector<8x32xf32>
    %159 = math.exp %158 : vector<8x32xf32>
    %cst_50 = arith.constant 1.000000e+00 : f32
    %160 = vector.broadcast %cst_50 : f32 to vector<8x32xf32>
    %161 = arith.addf %160, %159 : vector<8x32xf32>
    %162 = arith.divf %160, %161 : vector<8x32xf32>
    %163 = vector.extract_strided_slice %150 {offsets = [0, 64], sizes = [8, 32], strides = [1, 1]} : vector<8x128xf32> to vector<8x32xf32>
    %164 = math.tanh %163 : vector<8x32xf32>
    %165 = vector.extract_strided_slice %150 {offsets = [0, 96], sizes = [8, 32], strides = [1, 1]} : vector<8x128xf32> to vector<8x32xf32>
    %166 = arith.negf %165 : vector<8x32xf32>
    %167 = math.exp %166 : vector<8x32xf32>
    %cst_51 = arith.constant 1.000000e+00 : f32
    %168 = vector.broadcast %cst_51 : f32 to vector<8x32xf32>
    %169 = arith.addf %168, %167 : vector<8x32xf32>
    %170 = arith.divf %168, %169 : vector<8x32xf32>
    %171 = arith.mulf %162, %138 : vector<8x32xf32>
    %172 = arith.mulf %156, %164 : vector<8x32xf32>
    %173 = arith.addf %171, %172 : vector<8x32xf32>
    %174 = math.tanh %173 : vector<8x32xf32>
    %175 = arith.mulf %170, %174 : vector<8x32xf32>
    %176 = arith.index_cast %c4_i32 : i32 to index
    %c0_52 = arith.constant 0 : index
    %c0_53 = arith.constant 0 : index
    %177 = vector.load %arg3[%176, %c0_52, %c0_53] : memref<8x8x32xf32, #tpu.memory_space<vmem>>, vector<1x8x32xf32>
    %178 = vector.shape_cast %177 : vector<1x8x32xf32> to vector<8x32xf32>
    %179 = vector.shape_cast %175 : vector<8x32xf32> to vector<1x8x32xf32>
    tpu.vector_store %arg3[%176, %c0_52, %c0_53], %179 {strides = array<i32>} : memref<8x8x32xf32, #tpu.memory_space<vmem>>, vector<1x8x32xf32>,
    %c5_i32 = arith.constant 5 : i32
    %180 = arith.index_cast %c5_i32 : i32 to index
    %c0_54 = arith.constant 0 : index
    %c0_55 = arith.constant 0 : index
    %181 = vector.load %arg1[%180, %c0_54, %c0_55] : memref<8x8x128xf32, #tpu.memory_space<vmem>>, vector<1x8x128xf32>
    %182 = vector.shape_cast %181 : vector<1x8x128xf32> to vector<8x128xf32>
    %c0_56 = arith.constant 0 : index
    %c0_57 = arith.constant 0 : index
    %183 = vector.load %arg2[%c0_56, %c0_57] : memref<32x128xf32, #tpu.memory_space<vmem>>, vector<32x128xf32>
    %cst_58 = arith.constant dense<0.000000e+00> : vector<8x128xf32>
    %184 = tpu.matmul %175, %183, %cst_58 {dimension_numbers = #tpu.dot_dimension_numbers<[1], [0], [0], [1], [0, 0, 1, 1], [], []>} : vector<8x32xf32>, vector<32x128xf32>, vector<8x128xf32> -> vector<8x128xf32>
    %185 = arith.addf %182, %184 : vector<8x128xf32>
    %186 = vector.extract_strided_slice %185 {offsets = [0, 0], sizes = [8, 32], strides = [1, 1]} : vector<8x128xf32> to vector<8x32xf32>
    %187 = arith.negf %186 : vector<8x32xf32>
    %188 = math.exp %187 : vector<8x32xf32>
    %cst_59 = arith.constant 1.000000e+00 : f32
    %189 = vector.broadcast %cst_59 : f32 to vector<8x32xf32>
    %190 = arith.addf %189, %188 : vector<8x32xf32>
    %191 = arith.divf %189, %190 : vector<8x32xf32>
    %192 = vector.extract_strided_slice %185 {offsets = [0, 32], sizes = [8, 32], strides = [1, 1]} : vector<8x128xf32> to vector<8x32xf32>
    %193 = arith.negf %192 : vector<8x32xf32>
    %194 = math.exp %193 : vector<8x32xf32>
    %cst_60 = arith.constant 1.000000e+00 : f32
    %195 = vector.broadcast %cst_60 : f32 to vector<8x32xf32>
    %196 = arith.addf %195, %194 : vector<8x32xf32>
    %197 = arith.divf %195, %196 : vector<8x32xf32>
    %198 = vector.extract_strided_slice %185 {offsets = [0, 64], sizes = [8, 32], strides = [1, 1]} : vector<8x128xf32> to vector<8x32xf32>
    %199 = math.tanh %198 : vector<8x32xf32>
    %200 = vector.extract_strided_slice %185 {offsets = [0, 96], sizes = [8, 32], strides = [1, 1]} : vector<8x128xf32> to vector<8x32xf32>
    %201 = arith.negf %200 : vector<8x32xf32>
    %202 = math.exp %201 : vector<8x32xf32>
    %cst_61 = arith.constant 1.000000e+00 : f32
    %203 = vector.broadcast %cst_61 : f32 to vector<8x32xf32>
    %204 = arith.addf %203, %202 : vector<8x32xf32>
    %205 = arith.divf %203, %204 : vector<8x32xf32>
    %206 = arith.mulf %197, %173 : vector<8x32xf32>
    %207 = arith.mulf %191, %199 : vector<8x32xf32>
    %208 = arith.addf %206, %207 : vector<8x32xf32>
    %209 = math.tanh %208 : vector<8x32xf32>
    %210 = arith.mulf %205, %209 : vector<8x32xf32>
    %211 = arith.index_cast %c5_i32 : i32 to index
    %c0_62 = arith.constant 0 : index
    %c0_63 = arith.constant 0 : index
    %212 = vector.load %arg3[%211, %c0_62, %c0_63] : memref<8x8x32xf32, #tpu.memory_space<vmem>>, vector<1x8x32xf32>
    %213 = vector.shape_cast %212 : vector<1x8x32xf32> to vector<8x32xf32>
    %214 = vector.shape_cast %210 : vector<8x32xf32> to vector<1x8x32xf32>
    tpu.vector_store %arg3[%211, %c0_62, %c0_63], %214 {strides = array<i32>} : memref<8x8x32xf32, #tpu.memory_space<vmem>>, vector<1x8x32xf32>,
    %c6_i32 = arith.constant 6 : i32
    %215 = arith.index_cast %c6_i32 : i32 to index
    %c0_64 = arith.constant 0 : index
    %c0_65 = arith.constant 0 : index
    %216 = vector.load %arg1[%215, %c0_64, %c0_65] : memref<8x8x128xf32, #tpu.memory_space<vmem>>, vector<1x8x128xf32>
    %217 = vector.shape_cast %216 : vector<1x8x128xf32> to vector<8x128xf32>
    %c0_66 = arith.constant 0 : index
    %c0_67 = arith.constant 0 : index
    %218 = vector.load %arg2[%c0_66, %c0_67] : memref<32x128xf32, #tpu.memory_space<vmem>>, vector<32x128xf32>
    %cst_68 = arith.constant dense<0.000000e+00> : vector<8x128xf32>
    %219 = tpu.matmul %210, %218, %cst_68 {dimension_numbers = #tpu.dot_dimension_numbers<[1], [0], [0], [1], [0, 0, 1, 1], [], []>} : vector<8x32xf32>, vector<32x128xf32>, vector<8x128xf32> -> vector<8x128xf32>
    %220 = arith.addf %217, %219 : vector<8x128xf32>
    %221 = vector.extract_strided_slice %220 {offsets = [0, 0], sizes = [8, 32], strides = [1, 1]} : vector<8x128xf32> to vector<8x32xf32>
    %222 = arith.negf %221 : vector<8x32xf32>
    %223 = math.exp %222 : vector<8x32xf32>
    %cst_69 = arith.constant 1.000000e+00 : f32
    %224 = vector.broadcast %cst_69 : f32 to vector<8x32xf32>
    %225 = arith.addf %224, %223 : vector<8x32xf32>
    %226 = arith.divf %224, %225 : vector<8x32xf32>
    %227 = vector.extract_strided_slice %220 {offsets = [0, 32], sizes = [8, 32], strides = [1, 1]} : vector<8x128xf32> to vector<8x32xf32>
    %228 = arith.negf %227 : vector<8x32xf32>
    %229 = math.exp %228 : vector<8x32xf32>
    %cst_70 = arith.constant 1.000000e+00 : f32
    %230 = vector.broadcast %cst_70 : f32 to vector<8x32xf32>
    %231 = arith.addf %230, %229 : vector<8x32xf32>
    %232 = arith.divf %230, %231 : vector<8x32xf32>
    %233 = vector.extract_strided_slice %220 {offsets = [0, 64], sizes = [8, 32], strides = [1, 1]} : vector<8x128xf32> to vector<8x32xf32>
    %234 = math.tanh %233 : vector<8x32xf32>
    %235 = vector.extract_strided_slice %220 {offsets = [0, 96], sizes = [8, 32], strides = [1, 1]} : vector<8x128xf32> to vector<8x32xf32>
    %236 = arith.negf %235 : vector<8x32xf32>
    %237 = math.exp %236 : vector<8x32xf32>
    %cst_71 = arith.constant 1.000000e+00 : f32
    %238 = vector.broadcast %cst_71 : f32 to vector<8x32xf32>
    %239 = arith.addf %238, %237 : vector<8x32xf32>
    %240 = arith.divf %238, %239 : vector<8x32xf32>
    %241 = arith.mulf %232, %208 : vector<8x32xf32>
    %242 = arith.mulf %226, %234 : vector<8x32xf32>
    %243 = arith.addf %241, %242 : vector<8x32xf32>
    %244 = math.tanh %243 : vector<8x32xf32>
    %245 = arith.mulf %240, %244 : vector<8x32xf32>
    %246 = arith.index_cast %c6_i32 : i32 to index
    %c0_72 = arith.constant 0 : index
    %c0_73 = arith.constant 0 : index
    %247 = vector.load %arg3[%246, %c0_72, %c0_73] : memref<8x8x32xf32, #tpu.memory_space<vmem>>, vector<1x8x32xf32>
    %248 = vector.shape_cast %247 : vector<1x8x32xf32> to vector<8x32xf32>
    %249 = vector.shape_cast %245 : vector<8x32xf32> to vector<1x8x32xf32>
    tpu.vector_store %arg3[%246, %c0_72, %c0_73], %249 {strides = array<i32>} : memref<8x8x32xf32, #tpu.memory_space<vmem>>, vector<1x8x32xf32>,
    %c7_i32 = arith.constant 7 : i32
    %250 = arith.index_cast %c7_i32 : i32 to index
    %c0_74 = arith.constant 0 : index
    %c0_75 = arith.constant 0 : index
    %251 = vector.load %arg1[%250, %c0_74, %c0_75] : memref<8x8x128xf32, #tpu.memory_space<vmem>>, vector<1x8x128xf32>
    %252 = vector.shape_cast %251 : vector<1x8x128xf32> to vector<8x128xf32>
    %c0_76 = arith.constant 0 : index
    %c0_77 = arith.constant 0 : index
    %253 = vector.load %arg2[%c0_76, %c0_77] : memref<32x128xf32, #tpu.memory_space<vmem>>, vector<32x128xf32>
    %cst_78 = arith.constant dense<0.000000e+00> : vector<8x128xf32>
    %254 = tpu.matmul %245, %253, %cst_78 {dimension_numbers = #tpu.dot_dimension_numbers<[1], [0], [0], [1], [0, 0, 1, 1], [], []>} : vector<8x32xf32>, vector<32x128xf32>, vector<8x128xf32> -> vector<8x128xf32>
    %255 = arith.addf %252, %254 : vector<8x128xf32>
    %256 = vector.extract_strided_slice %255 {offsets = [0, 0], sizes = [8, 32], strides = [1, 1]} : vector<8x128xf32> to vector<8x32xf32>
    %257 = arith.negf %256 : vector<8x32xf32>
    %258 = math.exp %257 : vector<8x32xf32>
    %cst_79 = arith.constant 1.000000e+00 : f32
    %259 = vector.broadcast %cst_79 : f32 to vector<8x32xf32>
    %260 = arith.addf %259, %258 : vector<8x32xf32>
    %261 = arith.divf %259, %260 : vector<8x32xf32>
    %262 = vector.extract_strided_slice %255 {offsets = [0, 32], sizes = [8, 32], strides = [1, 1]} : vector<8x128xf32> to vector<8x32xf32>
    %263 = arith.negf %262 : vector<8x32xf32>
    %264 = math.exp %263 : vector<8x32xf32>
    %cst_80 = arith.constant 1.000000e+00 : f32
    %265 = vector.broadcast %cst_80 : f32 to vector<8x32xf32>
    %266 = arith.addf %265, %264 : vector<8x32xf32>
    %267 = arith.divf %265, %266 : vector<8x32xf32>
    %268 = vector.extract_strided_slice %255 {offsets = [0, 64], sizes = [8, 32], strides = [1, 1]} : vector<8x128xf32> to vector<8x32xf32>
    %269 = math.tanh %268 : vector<8x32xf32>
    %270 = vector.extract_strided_slice %255 {offsets = [0, 96], sizes = [8, 32], strides = [1, 1]} : vector<8x128xf32> to vector<8x32xf32>
    %271 = arith.negf %270 : vector<8x32xf32>
    %272 = math.exp %271 : vector<8x32xf32>
    %cst_81 = arith.constant 1.000000e+00 : f32
    %273 = vector.broadcast %cst_81 : f32 to vector<8x32xf32>
    %274 = arith.addf %273, %272 : vector<8x32xf32>
    %275 = arith.divf %273, %274 : vector<8x32xf32>
    %276 = arith.mulf %267, %243 : vector<8x32xf32>
    %277 = arith.mulf %261, %269 : vector<8x32xf32>
    %278 = arith.addf %276, %277 : vector<8x32xf32>
    %279 = math.tanh %278 : vector<8x32xf32>
    %280 = arith.mulf %275, %279 : vector<8x32xf32>
    %281 = arith.index_cast %c7_i32 : i32 to index
    %c0_82 = arith.constant 0 : index
    %c0_83 = arith.constant 0 : index
    %282 = vector.load %arg3[%281, %c0_82, %c0_83] : memref<8x8x32xf32, #tpu.memory_space<vmem>>, vector<1x8x32xf32>
    %283 = vector.shape_cast %282 : vector<1x8x32xf32> to vector<8x32xf32>
    %284 = vector.shape_cast %280 : vector<8x32xf32> to vector<1x8x32xf32>
    tpu.vector_store %arg3[%281, %c0_82, %c0_83], %284 {strides = array<i32>} : memref<8x8x32xf32, #tpu.memory_space<vmem>>, vector<1x8x32xf32>,
    %c8_i32 = arith.constant 8 : i32
    %c0_84 = arith.constant 0 : index
    %c0_85 = arith.constant 0 : index
    %285 = vector.load %arg6[%c0_84, %c0_85] : memref<8x32xf32, #tpu.memory_space<vmem>>, vector<8x32xf32>
    tpu.vector_store %arg6[%c0_84, %c0_85], %280 {strides = array<i32>} : memref<8x32xf32, #tpu.memory_space<vmem>>, vector<8x32xf32>,
    %c0_86 = arith.constant 0 : index
    %c0_87 = arith.constant 0 : index
    %286 = vector.load %arg7[%c0_86, %c0_87] : memref<8x32xf32, #tpu.memory_space<vmem>>, vector<8x32xf32>
    tpu.vector_store %arg7[%c0_86, %c0_87], %278 {strides = array<i32>} : memref<8x32xf32, #tpu.memory_space<vmem>>, vector<8x32xf32>,
    %c0_i32_88 = arith.constant 0 : i32
    %287 = arith.cmpi eq, %arg0, %c0_i32_88 : i32
    %288 = arith.extui %287 : i1 to i32
    %c0_i32_89 = arith.constant 0 : i32
    %289 = arith.cmpi ne, %288, %c0_i32_89 : i32
    scf.if %289 {
      %c0_90 = arith.constant 0 : index
      %c0_91 = arith.constant 0 : index
      %290 = vector.load %arg4[%c0_90, %c0_91] : memref<8x32xf32, #tpu.memory_space<vmem>>, vector<8x32xf32>
      tpu.vector_store %arg4[%c0_90, %c0_91], %280 {strides = array<i32>} : memref<8x32xf32, #tpu.memory_space<vmem>>, vector<8x32xf32>,
      %c0_92 = arith.constant 0 : index
      %c0_93 = arith.constant 0 : index
      %291 = vector.load %arg5[%c0_92, %c0_93] : memref<8x32xf32, #tpu.memory_space<vmem>>, vector<8x32xf32>
      tpu.vector_store %arg5[%c0_92, %c0_93], %278 {strides = array<i32>} : memref<8x32xf32, #tpu.memory_space<vmem>>, vector<8x32xf32>,
    } else {
    }
    return
  }
  func.func @transform_0(%arg0: i32) -> (i32, i32, i32) {
    %c0_i32 = arith.constant 0 : i32
    %c0_i32_0 = arith.constant 0 : i32
    %c0_i32_1 = arith.constant 0 : i32
    return %arg0, %c0_i32, %c0_i32_0 : i32, i32, i32
  }
  func.func @transform_1(%arg0: i32) -> (i32, i32) {
    %c0_i32 = arith.constant 0 : i32
    %c0_i32_0 = arith.constant 0 : i32
    %c0_i32_1 = arith.constant 0 : i32
    return %c0_i32, %c0_i32_0 : i32, i32
  }
  func.func @transform_2(%arg0: i32) -> (i32, i32, i32) {
    %c0_i32 = arith.constant 0 : i32
    %c0_i32_0 = arith.constant 0 : i32
    %c0_i32_1 = arith.constant 0 : i32
    return %arg0, %c0_i32, %c0_i32_0 : i32, i32, i32
  }
  func.func @transform_3(%arg0: i32) -> (i32, i32) {
    %c0_i32 = arith.constant 0 : i32
    %c0_i32_0 = arith.constant 0 : i32
    %c0_i32_1 = arith.constant 0 : i32
    return %c0_i32, %c0_i32_0 : i32, i32
  }
  func.func @transform_4(%arg0: i32) -> (i32, i32) {
    %c0_i32 = arith.constant 0 : i32
    %c0_i32_0 = arith.constant 0 : i32
    %c0_i32_1 = arith.constant 0 : i32
    return %c0_i32, %c0_i32_0 : i32, i32
  }
}

</mosaic_0001>

<llo_original>
// kernel: encoder_lstm_forward.6
$region0: #{encoder_lstm_forward.6}
  #allocation0 [shape = 'u32[]', space=smem, size = 0x4, offset = 0x4, fixed_abs, tag = 'smem constant byte address 0x4 - core index']
  #allocation1 [shape = 'u32[72,128]{1,0:T(1,128)}', space=vmem, size = 0x9000, scoped, tag = 'internal scratch']
  %s0 = inlined_call_operand.vmem [shape: f32[64,32], index: 0, kind: input, shape index: {}]
  %s1 = inlined_call_operand.vmem [shape: f32[32,128], index: 1, kind: input, shape index: {}]
  %s2 = inlined_call_operand.vmem [shape: f32[1,128], index: 2, kind: input, shape index: {}]
  %s3 = inlined_call_operand.vmem [shape: f32[64,128], index: 3, kind: output, shape index: {}]
  %s4 = sld [smem:[#allocation0]]
  $region22: #{encoder_lstm_forward.6} parent=0
    _
  %s6 = ssub.s32 1, %s4
  %s7 = scalar_select 0, %s6, %s4
  // Predicated region
  $region2: #{encoder_lstm_forward.6} parent=0 // pred_check
    _
  $region3: #{encoder_lstm_forward.6} parent=0 // pred_check_branch
    %9 = sbr.rel (0) target = $region5
  $region4: #{encoder_lstm_forward.6} parent=0 // pred_region
    _
  $region5: #{encoder_lstm_forward.6} parent=0 // pred_fallthru
    _
  // Predicated region
  $region6: #{encoder_lstm_forward.6} parent=0 // pred_check
    _
  $region7: #{encoder_lstm_forward.6} parent=0 // pred_check_branch
    %11 = sbr.rel (0) target = $region9
  $region8: #{encoder_lstm_forward.6} parent=0 // pred_region
    _
  $region9: #{encoder_lstm_forward.6} parent=0 // pred_fallthru
    _
  // Predicated region
  $region10: #{encoder_lstm_forward.6} parent=0 // pred_check
    _
  $region11: #{encoder_lstm_forward.6} parent=0 // pred_check_branch
    %13 = sbr.rel (0) target = $region13
  $region12: #{encoder_lstm_forward.6} parent=0 // pred_region
    _
  $region13: #{encoder_lstm_forward.6} parent=0 // pred_fallthru
    _
  %v14 = vld [vmem:[%s0] sm:$0xff]
  %v15 = vld [vmem:[%s0 + $0x8] sm:$0xff]
  %v16 = vld [vmem:[%s0 + $0x10] sm:$0xff]
  %v17 = vld [vmem:[%s0 + $0x18] sm:$0xff]
  %v18 = vld [vmem:[%s0 + $0x20] sm:$0xff]
  %v19 = vld [vmem:[%s0 + $0x28] sm:$0xff]
  %v20 = vld [vmem:[%s0 + $0x30] sm:$0xff]
  %v21 = vld [vmem:[%s0 + $0x38] sm:$0xff]
  %v22 = vld [vmem:[%s1] sm:$0xff]
  %v23 = vld [vmem:[%s1 + $0x8] sm:$0xff]
  %v24 = vld [vmem:[%s1 + $0x10] sm:$0xff]
  %v25 = vld [vmem:[%s1 + $0x18] sm:$0xff]
  %v26 = vld [vmem:[%s2] sm:$0x1]
  %v28 = vperm.slane %v26, 0
  %vm30 = vcmask 261120
  %v32 = vsel %vm30, %v14, 0
  %v35 = vsel %vm30, %v15, 0
  %v38 = vsel %vm30, %v16, 0
  %v41 = vsel %vm30, %v17, 0
  %v44 = vsel %vm30, %v18, 0
  %v47 = vsel %vm30, %v19, 0
  %v50 = vsel %vm30, %v20, 0
  %v53 = vsel %vm30, %v21, 0
  %55 = vmatpush.msra.mxu0 0.0
  %56 = vmatpush.msra.mxu0 0.0
  %57 = vmatpush.msra.mxu0 0.0
  %58 = vmatpush.msra.mxu0 0.0
  %59 = vmatpush.msra.mxu0 0.0
  %60 = vmatpush.msra.mxu0 0.0
  %61 = vmatpush.msra.mxu0 0.0
  %62 = vmatpush.msra.mxu0 0.0
  %63 = vmatpush.msra.mxu0 0.0
  %64 = vmatpush.msra.mxu0 0.0
  %65 = vmatpush.msra.mxu0 0.0
  %66 = vmatpush.msra.mxu0 0.0
  %67 = vmatpush.msra.mxu0 %v25
  %68 = vmatpush.msra.mxu0 %v24
  %69 = vmatpush.msra.mxu0 %v23
  %70 = vmatpush.msra.mxu0 %v22
  %71 = vmatmul.f32.gmra.mxu0 %v32
  %v72 = vpop.f32.mrf.mxu0
  %v73 = vadd.f32 %v28, %v72
  %74 = vmatmul.f32.gmra.mxu0 %v35
  %v75 = vpop.f32.mrf.mxu0
  %v76 = vadd.f32 %v28, %v75
  %77 = vmatmul.f32.gmra.mxu0 %v38
  %v78 = vpop.f32.mrf.mxu0
  %v79 = vadd.f32 %v28, %v78
  %80 = vmatmul.f32.gmra.mxu0 %v41
  %v81 = vpop.f32.mrf.mxu0
  %v82 = vadd.f32 %v28, %v81
  %83 = vmatmul.f32.gmra.mxu0 %v44
  %v84 = vpop.f32.mrf.mxu0
  %v85 = vadd.f32 %v28, %v84
  %86 = vmatmul.f32.gmra.mxu0 %v47
  %v87 = vpop.f32.mrf.mxu0
  %v88 = vadd.f32 %v28, %v87
  %89 = vmatmul.f32.gmra.mxu0 %v50
  %v90 = vpop.f32.mrf.mxu0
  %v91 = vadd.f32 %v28, %v90
  %92 = vmatmul.f32.gmra.mxu0 %v53
  %v93 = vpop.f32.mrf.mxu0
  %v94 = vadd.f32 %v28, %v93
  %95 = vdwg.mxu0
  %96 = vst [vmem:[%s3] sm:$0xff] %v73
  %97 = vst [vmem:[%s3 + $0x8] sm:$0xff] %v76
  %98 = vst [vmem:[%s3 + $0x10] sm:$0xff] %v79
  %99 = vst [vmem:[%s3 + $0x18] sm:$0xff] %v82
  %100 = vst [vmem:[%s3 + $0x20] sm:$0xff] %v85
  %101 = vst [vmem:[%s3 + $0x28] sm:$0xff] %v88
  %102 = vst [vmem:[%s3 + $0x30] sm:$0xff] %v91
  %103 = vst [vmem:[%s3 + $0x38] sm:$0xff] %v94
  // Predicated region
  $region14: #{encoder_lstm_forward.6} parent=0 // pred_check
    _
  $region15: #{encoder_lstm_forward.6} parent=0 // pred_check_branch
    %105 = sbr.rel (0) target = $region17
  $region16: #{encoder_lstm_forward.6} parent=0 // pred_region
    _
  $region17: #{encoder_lstm_forward.6} parent=0 // pred_fallthru
    _
  // Predicated region
  $region18: #{encoder_lstm_forward.6} parent=0 // pred_check
    _
  $region19: #{encoder_lstm_forward.6} parent=0 // pred_check_branch
    %107 = sbr.rel (0) target = $region21
  $region20: #{encoder_lstm_forward.6} parent=0 // pred_region
    _
  $region21: #{encoder_lstm_forward.6} parent=0 // pred_fallthru
    _

// kernel: encoder_lstm_forward.4
$region0: #{encoder_lstm_forward.4}
  #allocation0 [shape = 'u32[]', space=smem, size = 0x4, offset = 0x4, fixed_abs, tag = 'smem constant byte address 0x4 - core index']
  #allocation1 [shape = 'u32[72,128]{1,0:T(1,128)}', space=vmem, size = 0x9000, scoped, tag = 'internal scratch']
  %s0 = inlined_call_operand.vmem [shape: f32[64,16], index: 0, kind: input, shape index: {}]
  %s1 = inlined_call_operand.vmem [shape: f32[16,128], index: 1, kind: input, shape index: {}]
  %s2 = inlined_call_operand.vmem [shape: f32[1,128], index: 2, kind: input, shape index: {}]
  %s3 = inlined_call_operand.vmem [shape: f32[64,128], index: 3, kind: output, shape index: {}]
  %s4 = sld [smem:[#allocation0]]
  $region22: #{encoder_lstm_forward.4} parent=0
    _
  %s6 = ssub.s32 1, %s4
  %s7 = scalar_select 0, %s6, %s4
  // Predicated region
  $region2: #{encoder_lstm_forward.4} parent=0 // pred_check
    _
  $region3: #{encoder_lstm_forward.4} parent=0 // pred_check_branch
    %9 = sbr.rel (0) target = $region5
  $region4: #{encoder_lstm_forward.4} parent=0 // pred_region
    _
  $region5: #{encoder_lstm_forward.4} parent=0 // pred_fallthru
    _
  // Predicated region
  $region6: #{encoder_lstm_forward.4} parent=0 // pred_check
    _
  $region7: #{encoder_lstm_forward.4} parent=0 // pred_check_branch
    %11 = sbr.rel (0) target = $region9
  $region8: #{encoder_lstm_forward.4} parent=0 // pred_region
    _
  $region9: #{encoder_lstm_forward.4} parent=0 // pred_fallthru
    _
  // Predicated region
  $region10: #{encoder_lstm_forward.4} parent=0 // pred_check
    _
  $region11: #{encoder_lstm_forward.4} parent=0 // pred_check_branch
    %13 = sbr.rel (0) target = $region13
  $region12: #{encoder_lstm_forward.4} parent=0 // pred_region
    _
  $region13: #{encoder_lstm_forward.4} parent=0 // pred_fallthru
    _
  %v14 = vld [vmem:[%s0] sm:$0xff]
  %v15 = vld [vmem:[%s0 + $0x8] sm:$0xff]
  %v16 = vld [vmem:[%s0 + $0x10] sm:$0xff]
  %v17 = vld [vmem:[%s0 + $0x18] sm:$0xff]
  %v18 = vld [vmem:[%s0 + $0x20] sm:$0xff]
  %v19 = vld [vmem:[%s0 + $0x28] sm:$0xff]
  %v20 = vld [vmem:[%s0 + $0x30] sm:$0xff]
  %v21 = vld [vmem:[%s0 + $0x38] sm:$0xff]
  %v22 = vld [vmem:[%s1] sm:$0xff]
  %v23 = vld [vmem:[%s1 + $0x8] sm:$0xff]
  %v24 = vld [vmem:[%s2] sm:$0x1]
  %v26 = vperm.slane %v24, 0
  %vm28 = vcmask 130048
  %v30 = vsel %vm28, %v14, 0
  %v33 = vsel %vm28, %v15, 0
  %v36 = vsel %vm28, %v16, 0
  %v39 = vsel %vm28, %v17, 0
  %v42 = vsel %vm28, %v18, 0
  %v45 = vsel %vm28, %v19, 0
  %v48 = vsel %vm28, %v20, 0
  %v51 = vsel %vm28, %v21, 0
  %53 = vmatpush.msra.mxu0 0.0
  %54 = vmatpush.msra.mxu0 0.0
  %55 = vmatpush.msra.mxu0 0.0
  %56 = vmatpush.msra.mxu0 0.0
  %57 = vmatpush.msra.mxu0 0.0
  %58 = vmatpush.msra.mxu0 0.0
  %59 = vmatpush.msra.mxu0 0.0
  %60 = vmatpush.msra.mxu0 0.0
  %61 = vmatpush.msra.mxu0 0.0
  %62 = vmatpush.msra.mxu0 0.0
  %63 = vmatpush.msra.mxu0 0.0
  %64 = vmatpush.msra.mxu0 0.0
  %65 = vmatpush.msra.mxu0 0.0
  %66 = vmatpush.msra.mxu0 0.0
  %67 = vmatpush.msra.mxu0 %v23
  %68 = vmatpush.msra.mxu0 %v22
  %69 = vmatmul.f32.gmra.mxu0 %v30
  %v70 = vpop.f32.mrf.mxu0
  %v71 = vadd.f32 %v26, %v70
  %72 = vmatmul.f32.gmra.mxu0 %v33
  %v73 = vpop.f32.mrf.mxu0
  %v74 = vadd.f32 %v26, %v73
  %75 = vmatmul.f32.gmra.mxu0 %v36
  %v76 = vpop.f32.mrf.mxu0
  %v77 = vadd.f32 %v26, %v76
  %78 = vmatmul.f32.gmra.mxu0 %v39
  %v79 = vpop.f32.mrf.mxu0
  %v80 = vadd.f32 %v26, %v79
  %81 = vmatmul.f32.gmra.mxu0 %v42
  %v82 = vpop.f32.mrf.mxu0
  %v83 = vadd.f32 %v26, %v82
  %84 = vmatmul.f32.gmra.mxu0 %v45
  %v85 = vpop.f32.mrf.mxu0
  %v86 = vadd.f32 %v26, %v85
  %87 = vmatmul.f32.gmra.mxu0 %v48
  %v88 = vpop.f32.mrf.mxu0
  %v89 = vadd.f32 %v26, %v88
  %90 = vmatmul.f32.gmra.mxu0 %v51
  %v91 = vpop.f32.mrf.mxu0
  %v92 = vadd.f32 %v26, %v91
  %93 = vdwg.mxu0
  %94 = vst [vmem:[%s3] sm:$0xff] %v71
  %95 = vst [vmem:[%s3 + $0x8] sm:$0xff] %v74
  %96 = vst [vmem:[%s3 + $0x10] sm:$0xff] %v77
  %97 = vst [vmem:[%s3 + $0x18] sm:$0xff] %v80
  %98 = vst [vmem:[%s3 + $0x20] sm:$0xff] %v83
  %99 = vst [vmem:[%s3 + $0x28] sm:$0xff] %v86
  %100 = vst [vmem:[%s3 + $0x30] sm:$0xff] %v89
  %101 = vst [vmem:[%s3 + $0x38] sm:$0xff] %v92
  // Predicated region
  $region14: #{encoder_lstm_forward.4} parent=0 // pred_check
    _
  $region15: #{encoder_lstm_forward.4} parent=0 // pred_check_branch
    %103 = sbr.rel (0) target = $region17
  $region16: #{encoder_lstm_forward.4} parent=0 // pred_region
    _
  $region17: #{encoder_lstm_forward.4} parent=0 // pred_fallthru
    _
  // Predicated region
  $region18: #{encoder_lstm_forward.4} parent=0 // pred_check
    _
  $region19: #{encoder_lstm_forward.4} parent=0 // pred_check_branch
    %105 = sbr.rel (0) target = $region21
  $region20: #{encoder_lstm_forward.4} parent=0 // pred_region
    _
  $region21: #{encoder_lstm_forward.4} parent=0 // pred_fallthru
    _

// kernel: encoder_lstm_forward.5
$region0: #{encoder_lstm_forward.5}
  #allocation0 [shape = 'u32[]', space=smem, size = 0x4, offset = 0x4, fixed_abs, tag = 'smem constant byte address 0x4 - core index']
  #allocation1 [shape = 'u32[72,128]{1,0:T(1,128)}', space=vmem, size = 0x9000, scoped, tag = 'internal scratch']
  #allocation2 [shape = 'f32[8,32]{1,0:T(8,128)}', space=vmem, size = 0x1000, scoped, tag = 'scratch operand']
  #allocation3 [shape = 'f32[8,32]{1,0:T(8,128)}', space=vmem, size = 0x1000, scoped, tag = 'scratch operand']
  %s0 = inlined_call_operand.vmem [shape: f32[8,8,128], index: 0, kind: input, shape index: {}]
  %s1 = inlined_call_operand.vmem [shape: f32[32,128], index: 1, kind: input, shape index: {}]
  %s2 = inlined_call_operand.vmem [shape: f32[8,8,32], index: 2, kind: output, shape index: {0}]
  %s3 = inlined_call_operand.vmem [shape: f32[8,32], index: 3, kind: output, shape index: {1}]
  %s4 = inlined_call_operand.vmem [shape: f32[8,32], index: 4, kind: output, shape index: {2}]
  %5 = xla_tuple %s2, %s3, %s4
  %s6 = sld [smem:[#allocation0]]
  $region42: #{encoder_lstm_forward.5} parent=0
    _
  %s8 = ssub.s32 1, %s6
  %s9 = scalar_select 0, %s8, %s6
  // Predicated region
  $region2: #{encoder_lstm_forward.5} parent=0 // pred_check
    _
  $region3: #{encoder_lstm_forward.5} parent=0 // pred_check_branch
    %11 = sbr.rel (0) target = $region5
  $region4: #{encoder_lstm_forward.5} parent=0 // pred_region
    _
  $region5: #{encoder_lstm_forward.5} parent=0 // pred_fallthru
    _
  // Predicated region
  $region6: #{encoder_lstm_forward.5} parent=0 // pred_check
    _
  $region7: #{encoder_lstm_forward.5} parent=0 // pred_check_branch
    %13 = sbr.rel (0) target = $region9
  $region8: #{encoder_lstm_forward.5} parent=0 // pred_region
    _
  $region9: #{encoder_lstm_forward.5} parent=0 // pred_fallthru
    _
  %p14 = scmp.eq.s32.totalorder 0, 0
  // Predicated region
  $region10: #{encoder_lstm_forward.5} parent=0 // pred_check
    %p15 = pneg %p14
  $region11: #{encoder_lstm_forward.5} parent=0 // pred_check_branch
    %17 = sbr.rel (%p15) target = $region13
  $region12: #{encoder_lstm_forward.5} parent=0 // pred_region
    %vm18 = vcmask 261120
    %19 = vst.msk [vmem:[#allocation2] sm:$0xff] %vm18, 0.0
    %20 = vst.msk [vmem:[#allocation3] sm:$0xff] %vm18, 0.0
  $region13: #{encoder_lstm_forward.5} parent=0 // pred_fallthru
    _
  %v21 = vld [vmem:[#allocation2] sm:$0xff]
  %v22 = vld [vmem:[#allocation3] sm:$0xff]
  %v23 = vld [vmem:[%s0] sm:$0xff]
  %v24 = vld [vmem:[%s1] sm:$0xff]
  %v25 = vld [vmem:[%s1 + $0x8] sm:$0xff]
  %v26 = vld [vmem:[%s1 + $0x10] sm:$0xff]
  %v27 = vld [vmem:[%s1 + $0x18] sm:$0xff]
  %vm28 = vcmask 261120
  %v30 = vsel %vm28, %v21, 0
  %32 = vmatpush.msra.mxu0 0.0
  %33 = vmatpush.msra.mxu0 0.0
  %34 = vmatpush.msra.mxu0 0.0
  %35 = vmatpush.msra.mxu0 0.0
  %36 = vmatpush.msra.mxu0 0.0
  %37 = vmatpush.msra.mxu0 0.0
  %38 = vmatpush.msra.mxu0 0.0
  %39 = vmatpush.msra.mxu0 0.0
  %40 = vmatpush.msra.mxu0 0.0
  %41 = vmatpush.msra.mxu0 0.0
  %42 = vmatpush.msra.mxu0 0.0
  %43 = vmatpush.msra.mxu0 0.0
  %44 = vmatpush.msra.mxu0 %v27
  %45 = vmatpush.msra.mxu0 %v26
  %46 = vmatpush.msra.mxu0 %v25
  %47 = vmatpush.msra.mxu0 %v24
  %48 = vmatmul.f32.gmra.mxu0 %v30
  %v49 = vpop.f32.mrf.mxu0
  %v50 = vadd.f32 0.0, %v49
  %51 = vdwg.mxu0
  %v52 = vadd.f32 %v23, %v50
  %v53 = vxor.u32 %v52, 2147483648
  %v54 = vmul.f32 %v53, 1.442695
  %v55 = vpow.pop %v54
  %v56 = vadd.f32 %v55, 1.0
  %v57 = vrcp.pop %v56
  %v58 = vmul.f32 %v56, %v57
  %v59 = vsub.f32 1.0, %v58
  %v60 = vmul.f32 %v57, %v59
  %v61 = vadd.f32 %v57, %v60
  %vm62 = vweird.f32 %v56
  %vm63 = vweird.f32 %v57
  %vm64 = vmor %vm62, %vm63
  %v65 = vsel %vm64, %v57, %v61
  %v66 = vand.u32 2147483647, %v56
  %vm67 = vcmp.eq.f32.partialorder %v66, 8.507059e+37
  %v68 = vand.u32 %v56, 2147483648
  %v69 = vor.u32 1.1754944e-38, %v68
  %v70 = vsel %vm67, %v69, %v65
  %v71 = vmul.f32 1.0, %v70
  %v72 = vtanh.pop %v52
  %74 = vrot.lane.b32.xlu0 %v22, 32
  %v75 = vpop.permute.xlu0 %74
  %v77 = vmul.f32 %v71, %v75
  %79 = vrot.lane.b32.xlu0 %v72, 64
  %v80 = vpop.permute.xlu0 %79
  %v82 = vmul.f32 %v71, %v80
  %84 = vrot.lane.b32.xlu0 %v82, 32
  %v85 = vpop.permute.xlu0 %84
  %v87 = vadd.f32 %v77, %v85
  %v88 = vtanh.pop %v87
  %90 = vrot.lane.b32.xlu0 %v88, 64
  %v91 = vpop.permute.xlu0 %90
  %v93 = vmul.f32 %v71, %v91
  %95 = vrot.lane.b32.xlu0 %v93, 32
  %v96 = vpop.permute.xlu0 %95
  %98 = vst.msk [vmem:[%s2] sm:$0xff] %vm28, %v96
  %s99 = scalar_lea.vmem %s0, 8
  %v100 = vld [vmem:[%s99] sm:$0xff]
  %v101 = vld [vmem:[%s1] sm:$0xff]
  %v102 = vld [vmem:[%s1 + $0x8] sm:$0xff]
  %v103 = vld [vmem:[%s1 + $0x10] sm:$0xff]
  %v104 = vld [vmem:[%s1 + $0x18] sm:$0xff]
  %v105 = vsel %vm28, %v96, 0
  %107 = vmatpush.msra.mxu0 0.0
  %108 = vmatpush.msra.mxu0 0.0
  %109 = vmatpush.msra.mxu0 0.0
  %110 = vmatpush.msra.mxu0 0.0
  %111 = vmatpush.msra.mxu0 0.0
  %112 = vmatpush.msra.mxu0 0.0
  %113 = vmatpush.msra.mxu0 0.0
  %114 = vmatpush.msra.mxu0 0.0
  %115 = vmatpush.msra.mxu0 0.0
  %116 = vmatpush.msra.mxu0 0.0
  %117 = vmatpush.msra.mxu0 0.0
  %118 = vmatpush.msra.mxu0 0.0
  %119 = vmatpush.msra.mxu0 %v104
  %120 = vmatpush.msra.mxu0 %v103
  %121 = vmatpush.msra.mxu0 %v102
  %122 = vmatpush.msra.mxu0 %v101
  %123 = vmatmul.f32.gmra.mxu0 %v105
  %v124 = vpop.f32.mrf.mxu0
  %v125 = vadd.f32 0.0, %v124
  %126 = vdwg.mxu0
  %v127 = vadd.f32 %v100, %v125
  %v128 = vxor.u32 %v127, 2147483648
  %v129 = vmul.f32 %v128, 1.442695
  %v130 = vpow.pop %v129
  %v131 = vadd.f32 %v130, 1.0
  %v132 = vrcp.pop %v131
  %v133 = vmul.f32 %v131, %v132
  %v134 = vsub.f32 1.0, %v133
  %v135 = vmul.f32 %v132, %v134
  %v136 = vadd.f32 %v132, %v135
  %vm137 = vweird.f32 %v131
  %vm138 = vweird.f32 %v132
  %vm139 = vmor %vm137, %vm138
  %v140 = vsel %vm139, %v132, %v136
  %v141 = vand.u32 2147483647, %v131
  %vm142 = vcmp.eq.f32.partialorder %v141, 8.507059e+37
  %v143 = vand.u32 %v131, 2147483648
  %v144 = vor.u32 1.1754944e-38, %v143
  %v145 = vsel %vm142, %v144, %v140
  %v146 = vmul.f32 1.0, %v145
  %v147 = vtanh.pop %v127
  %v148 = vmul.f32 %v146, %v87
  %150 = vrot.lane.b32.xlu0 %v147, 64
  %v151 = vpop.permute.xlu0 %150
  %v153 = vmul.f32 %v146, %v151
  %155 = vrot.lane.b32.xlu0 %v153, 32
  %v156 = vpop.permute.xlu0 %155
  %v158 = vadd.f32 %v148, %v156
  %v159 = vtanh.pop %v158
  %161 = vrot.lane.b32.xlu0 %v159, 64
  %v162 = vpop.permute.xlu0 %161
  %v164 = vmul.f32 %v146, %v162
  %166 = vrot.lane.b32.xlu0 %v164, 32
  %v167 = vpop.permute.xlu0 %166
  %s169 = scalar_lea.vmem %s2, 8
  %170 = vst.msk [vmem:[%s169] sm:$0xff] %vm28, %v167
  %s171 = scalar_lea.vmem %s0, 16
  %v172 = vld [vmem:[%s171] sm:$0xff]
  %v173 = vld [vmem:[%s1] sm:$0xff]
  %v174 = vld [vmem:[%s1 + $0x8] sm:$0xff]
  %v175 = vld [vmem:[%s1 + $0x10] sm:$0xff]
  %v176 = vld [vmem:[%s1 + $0x18] sm:$0xff]
  %v177 = vsel %vm28, %v167, 0
  %179 = vmatpush.msra.mxu0 0.0
  %180 = vmatpush.msra.mxu0 0.0
  %181 = vmatpush.msra.mxu0 0.0
  %182 = vmatpush.msra.mxu0 0.0
  %183 = vmatpush.msra.mxu0 0.0
  %184 = vmatpush.msra.mxu0 0.0
  %185 = vmatpush.msra.mxu0 0.0
  %186 = vmatpush.msra.mxu0 0.0
  %187 = vmatpush.msra.mxu0 0.0
  %188 = vmatpush.msra.mxu0 0.0
  %189 = vmatpush.msra.mxu0 0.0
  %190 = vmatpush.msra.mxu0 0.0
  %191 = vmatpush.msra.mxu0 %v176
  %192 = vmatpush.msra.mxu0 %v175
  %193 = vmatpush.msra.mxu0 %v174
  %194 = vmatpush.msra.mxu0 %v173
  %195 = vmatmul.f32.gmra.mxu0 %v177
  %v196 = vpop.f32.mrf.mxu0
  %v197 = vadd.f32 0.0, %v196
  %198 = vdwg.mxu0
  %v199 = vadd.f32 %v172, %v197
  %v200 = vxor.u32 %v199, 2147483648
  %v201 = vmul.f32 %v200, 1.442695
  %v202 = vpow.pop %v201
  %v203 = vadd.f32 %v202, 1.0
  %v204 = vrcp.pop %v203
  %v205 = vmul.f32 %v203, %v204
  %v206 = vsub.f32 1.0, %v205
  %v207 = vmul.f32 %v204, %v206
  %v208 = vadd.f32 %v204, %v207
  %vm209 = vweird.f32 %v203
  %vm210 = vweird.f32 %v204
  %vm211 = vmor %vm209, %vm210
  %v212 = vsel %vm211, %v204, %v208
  %v213 = vand.u32 2147483647, %v203
  %vm214 = vcmp.eq.f32.partialorder %v213, 8.507059e+37
  %v215 = vand.u32 %v203, 2147483648
  %v216 = vor.u32 1.1754944e-38, %v215
  %v217 = vsel %vm214, %v216, %v212
  %v218 = vmul.f32 1.0, %v217
  %v219 = vtanh.pop %v199
  %v220 = vmul.f32 %v218, %v158
  %222 = vrot.lane.b32.xlu0 %v219, 64
  %v223 = vpop.permute.xlu0 %222
  %v225 = vmul.f32 %v218, %v223
  %227 = vrot.lane.b32.xlu0 %v225, 32
  %v228 = vpop.permute.xlu0 %227
  %v230 = vadd.f32 %v220, %v228
  %v231 = vtanh.pop %v230
  %233 = vrot.lane.b32.xlu0 %v231, 64
  %v234 = vpop.permute.xlu0 %233
  %v236 = vmul.f32 %v218, %v234
  %238 = vrot.lane.b32.xlu0 %v236, 32
  %v239 = vpop.permute.xlu0 %238
  %s241 = scalar_lea.vmem %s2, 16
  %242 = vst.msk [vmem:[%s241] sm:$0xff] %vm28, %v239
  %s243 = scalar_lea.vmem %s0, 24
  %v244 = vld [vmem:[%s243] sm:$0xff]
  %v245 = vld [vmem:[%s1] sm:$0xff]
  %v246 = vld [vmem:[%s1 + $0x8] sm:$0xff]
  %v247 = vld [vmem:[%s1 + $0x10] sm:$0xff]
  %v248 = vld [vmem:[%s1 + $0x18] sm:$0xff]
  %v249 = vsel %vm28, %v239, 0
  %251 = vmatpush.msra.mxu0 0.0
  %252 = vmatpush.msra.mxu0 0.0
  %253 = vmatpush.msra.mxu0 0.0
  %254 = vmatpush.msra.mxu0 0.0
  %255 = vmatpush.msra.mxu0 0.0
  %256 = vmatpush.msra.mxu0 0.0
  %257 = vmatpush.msra.mxu0 0.0
  %258 = vmatpush.msra.mxu0 0.0
  %259 = vmatpush.msra.mxu0 0.0
  %260 = vmatpush.msra.mxu0 0.0
  %261 = vmatpush.msra.mxu0 0.0
  %262 = vmatpush.msra.mxu0 0.0
  %263 = vmatpush.msra.mxu0 %v248
  %264 = vmatpush.msra.mxu0 %v247
  %265 = vmatpush.msra.mxu0 %v246
  %266 = vmatpush.msra.mxu0 %v245
  %267 = vmatmul.f32.gmra.mxu0 %v249
  %v268 = vpop.f32.mrf.mxu0
  %v269 = vadd.f32 0.0, %v268
  %270 = vdwg.mxu0
  %v271 = vadd.f32 %v244, %v269
  %v272 = vxor.u32 %v271, 2147483648
  %v273 = vmul.f32 %v272, 1.442695
  %v274 = vpow.pop %v273
  %v275 = vadd.f32 %v274, 1.0
  %v276 = vrcp.pop %v275
  %v277 = vmul.f32 %v275, %v276
  %v278 = vsub.f32 1.0, %v277
  %v279 = vmul.f32 %v276, %v278
  %v280 = vadd.f32 %v276, %v279
  %vm281 = vweird.f32 %v275
  %vm282 = vweird.f32 %v276
  %vm283 = vmor %vm281, %vm282
  %v284 = vsel %vm283, %v276, %v280
  %v285 = vand.u32 2147483647, %v275
  %vm286 = vcmp.eq.f32.partialorder %v285, 8.507059e+37
  %v287 = vand.u32 %v275, 2147483648
  %v288 = vor.u32 1.1754944e-38, %v287
  %v289 = vsel %vm286, %v288, %v284
  %v290 = vmul.f32 1.0, %v289
  %v291 = vtanh.pop %v271
  %v292 = vmul.f32 %v290, %v230
  %294 = vrot.lane.b32.xlu0 %v291, 64
  %v295 = vpop.permute.xlu0 %294
  %v297 = vmul.f32 %v290, %v295
  %299 = vrot.lane.b32.xlu0 %v297, 32
  %v300 = vpop.permute.xlu0 %299
  %v302 = vadd.f32 %v292, %v300
  %v303 = vtanh.pop %v302
  %305 = vrot.lane.b32.xlu0 %v303, 64
  %v306 = vpop.permute.xlu0 %305
  %v308 = vmul.f32 %v290, %v306
  %310 = vrot.lane.b32.xlu0 %v308, 32
  %v311 = vpop.permute.xlu0 %310
  %s313 = scalar_lea.vmem %s2, 24
  %314 = vst.msk [vmem:[%s313] sm:$0xff] %vm28, %v311
  %s315 = scalar_lea.vmem %s0, 32
  %v316 = vld [vmem:[%s315] sm:$0xff]
  %v317 = vld [vmem:[%s1] sm:$0xff]
  %v318 = vld [vmem:[%s1 + $0x8] sm:$0xff]
  %v319 = vld [vmem:[%s1 + $0x10] sm:$0xff]
  %v320 = vld [vmem:[%s1 + $0x18] sm:$0xff]
  %v321 = vsel %vm28, %v311, 0
  %323 = vmatpush.msra.mxu0 0.0
  %324 = vmatpush.msra.mxu0 0.0
  %325 = vmatpush.msra.mxu0 0.0
  %326 = vmatpush.msra.mxu0 0.0
  %327 = vmatpush.msra.mxu0 0.0
  %328 = vmatpush.msra.mxu0 0.0
  %329 = vmatpush.msra.mxu0 0.0
  %330 = vmatpush.msra.mxu0 0.0
  %331 = vmatpush.msra.mxu0 0.0
  %332 = vmatpush.msra.mxu0 0.0
  %333 = vmatpush.msra.mxu0 0.0
  %334 = vmatpush.msra.mxu0 0.0
  %335 = vmatpush.msra.mxu0 %v320
  %336 = vmatpush.msra.mxu0 %v319
  %337 = vmatpush.msra.mxu0 %v318
  %338 = vmatpush.msra.mxu0 %v317
  %339 = vmatmul.f32.gmra.mxu0 %v321
  %v340 = vpop.f32.mrf.mxu0
  %v341 = vadd.f32 0.0, %v340
  %342 = vdwg.mxu0
  %v343 = vadd.f32 %v316, %v341
  %v344 = vxor.u32 %v343, 2147483648
  %v345 = vmul.f32 %v344, 1.442695
  %v346 = vpow.pop %v345
  %v347 = vadd.f32 %v346, 1.0
  %v348 = vrcp.pop %v347
  %v349 = vmul.f32 %v347, %v348
  %v350 = vsub.f32 1.0, %v349
  %v351 = vmul.f32 %v348, %v350
  %v352 = vadd.f32 %v348, %v351
  %vm353 = vweird.f32 %v347
  %vm354 = vweird.f32 %v348
  %vm355 = vmor %vm353, %vm354
  %v356 = vsel %vm355, %v348, %v352
  %v357 = vand.u32 2147483647, %v347
  %vm358 = vcmp.eq.f32.partialorder %v357, 8.507059e+37
  %v359 = vand.u32 %v347, 2147483648
  %v360 = vor.u32 1.1754944e-38, %v359
  %v361 = vsel %vm358, %v360, %v356
  %v362 = vmul.f32 1.0, %v361
  %v363 = vtanh.pop %v343
  %v364 = vmul.f32 %v362, %v302
  %366 = vrot.lane.b32.xlu0 %v363, 64
  %v367 = vpop.permute.xlu0 %366
  %v369 = vmul.f32 %v362, %v367
  %371 = vrot.lane.b32.xlu0 %v369, 32
  %v372 = vpop.permute.xlu0 %371
  %v374 = vadd.f32 %v364, %v372
  %v375 = vtanh.pop %v374
  %377 = vrot.lane.b32.xlu0 %v375, 64
  %v378 = vpop.permute.xlu0 %377
  %v380 = vmul.f32 %v362, %v378
  %382 = vrot.lane.b32.xlu0 %v380, 32
  %v383 = vpop.permute.xlu0 %382
  %s385 = scalar_lea.vmem %s2, 32
  %386 = vst.msk [vmem:[%s385] sm:$0xff] %vm28, %v383
  %s387 = scalar_lea.vmem %s0, 40
  %v388 = vld [vmem:[%s387] sm:$0xff]
  %v389 = vld [vmem:[%s1] sm:$0xff]
  %v390 = vld [vmem:[%s1 + $0x8] sm:$0xff]
  %v391 = vld [vmem:[%s1 + $0x10] sm:$0xff]
  %v392 = vld [vmem:[%s1 + $0x18] sm:$0xff]
  %v393 = vsel %vm28, %v383, 0
  %395 = vmatpush.msra.mxu0 0.0
  %396 = vmatpush.msra.mxu0 0.0
  %397 = vmatpush.msra.mxu0 0.0
  %398 = vmatpush.msra.mxu0 0.0
  %399 = vmatpush.msra.mxu0 0.0
  %400 = vmatpush.msra.mxu0 0.0
  %401 = vmatpush.msra.mxu0 0.0
  %402 = vmatpush.msra.mxu0 0.0
  %403 = vmatpush.msra.mxu0 0.0
  %404 = vmatpush.msra.mxu0 0.0
  %405 = vmatpush.msra.mxu0 0.0
  %406 = vmatpush.msra.mxu0 0.0
  %407 = vmatpush.msra.mxu0 %v392
  %408 = vmatpush.msra.mxu0 %v391
  %409 = vmatpush.msra.mxu0 %v390
  %410 = vmatpush.msra.mxu0 %v389
  %411 = vmatmul.f32.gmra.mxu0 %v393
  %v412 = vpop.f32.mrf.mxu0
  %v413 = vadd.f32 0.0, %v412
  %414 = vdwg.mxu0
  %v415 = vadd.f32 %v388, %v413
  %v416 = vxor.u32 %v415, 2147483648
  %v417 = vmul.f32 %v416, 1.442695
  %v418 = vpow.pop %v417
  %v419 = vadd.f32 %v418, 1.0
  %v420 = vrcp.pop %v419
  %v421 = vmul.f32 %v419, %v420
  %v422 = vsub.f32 1.0, %v421
  %v423 = vmul.f32 %v420, %v422
  %v424 = vadd.f32 %v420, %v423
  %vm425 = vweird.f32 %v419
  %vm426 = vweird.f32 %v420
  %vm427 = vmor %vm425, %vm426
  %v428 = vsel %vm427, %v420, %v424
  %v429 = vand.u32 2147483647, %v419
  %vm430 = vcmp.eq.f32.partialorder %v429, 8.507059e+37
  %v431 = vand.u32 %v419, 2147483648
  %v432 = vor.u32 1.1754944e-38, %v431
  %v433 = vsel %vm430, %v432, %v428
  %v434 = vmul.f32 1.0, %v433
  %v435 = vtanh.pop %v415
  %v436 = vmul.f32 %v434, %v374
  %438 = vrot.lane.b32.xlu0 %v435, 64
  %v439 = vpop.permute.xlu0 %438
  %v441 = vmul.f32 %v434, %v439
  %443 = vrot.lane.b32.xlu0 %v441, 32
  %v444 = vpop.permute.xlu0 %443
  %v446 = vadd.f32 %v436, %v444
  %v447 = vtanh.pop %v446
  %449 = vrot.lane.b32.xlu0 %v447, 64
  %v450 = vpop.permute.xlu0 %449
  %v452 = vmul.f32 %v434, %v450
  %454 = vrot.lane.b32.xlu0 %v452, 32
  %v455 = vpop.permute.xlu0 %454
  %s457 = scalar_lea.vmem %s2, 40
  %458 = vst.msk [vmem:[%s457] sm:$0xff] %vm28, %v455
  %s459 = scalar_lea.vmem %s0, 48
  %v460 = vld [vmem:[%s459] sm:$0xff]
  %v461 = vld [vmem:[%s1] sm:$0xff]
  %v462 = vld [vmem:[%s1 + $0x8] sm:$0xff]
  %v463 = vld [vmem:[%s1 + $0x10] sm:$0xff]
  %v464 = vld [vmem:[%s1 + $0x18] sm:$0xff]
  %v465 = vsel %vm28, %v455, 0
  %467 = vmatpush.msra.mxu0 0.0
  %468 = vmatpush.msra.mxu0 0.0
  %469 = vmatpush.msra.mxu0 0.0
  %470 = vmatpush.msra.mxu0 0.0
  %471 = vmatpush.msra.mxu0 0.0
  %472 = vmatpush.msra.mxu0 0.0
  %473 = vmatpush.msra.mxu0 0.0
  %474 = vmatpush.msra.mxu0 0.0
  %475 = vmatpush.msra.mxu0 0.0
  %476 = vmatpush.msra.mxu0 0.0
  %477 = vmatpush.msra.mxu0 0.0
  %478 = vmatpush.msra.mxu0 0.0
  %479 = vmatpush.msra.mxu0 %v464
  %480 = vmatpush.msra.mxu0 %v463
  %481 = vmatpush.msra.mxu0 %v462
  %482 = vmatpush.msra.mxu0 %v461
  %483 = vmatmul.f32.gmra.mxu0 %v465
  %v484 = vpop.f32.mrf.mxu0
  %v485 = vadd.f32 0.0, %v484
  %486 = vdwg.mxu0
  %v487 = vadd.f32 %v460, %v485
  %v488 = vxor.u32 %v487, 2147483648
  %v489 = vmul.f32 %v488, 1.442695
  %v490 = vpow.pop %v489
  %v491 = vadd.f32 %v490, 1.0
  %v492 = vrcp.pop %v491
  %v493 = vmul.f32 %v491, %v492
  %v494 = vsub.f32 1.0, %v493
  %v495 = vmul.f32 %v492, %v494
  %v496 = vadd.f32 %v492, %v495
  %vm497 = vweird.f32 %v491
  %vm498 = vweird.f32 %v492
  %vm499 = vmor %vm497, %vm498
  %v500 = vsel %vm499, %v492, %v496
  %v501 = vand.u32 2147483647, %v491
  %vm502 = vcmp.eq.f32.partialorder %v501, 8.507059e+37
  %v503 = vand.u32 %v491, 2147483648
  %v504 = vor.u32 1.1754944e-38, %v503
  %v505 = vsel %vm502, %v504, %v500
  %v506 = vmul.f32 1.0, %v505
  %v507 = vtanh.pop %v487
  %v508 = vmul.f32 %v506, %v446
  %510 = vrot.lane.b32.xlu0 %v507, 64
  %v511 = vpop.permute.xlu0 %510
  %v513 = vmul.f32 %v506, %v511
  %515 = vrot.lane.b32.xlu0 %v513, 32
  %v516 = vpop.permute.xlu0 %515
  %v518 = vadd.f32 %v508, %v516
  %v519 = vtanh.pop %v518
  %521 = vrot.lane.b32.xlu0 %v519, 64
  %v522 = vpop.permute.xlu0 %521
  %v524 = vmul.f32 %v506, %v522
  %526 = vrot.lane.b32.xlu0 %v524, 32
  %v527 = vpop.permute.xlu0 %526
  %s529 = scalar_lea.vmem %s2, 48
  %530 = vst.msk [vmem:[%s529] sm:$0xff] %vm28, %v527
  %s531 = scalar_lea.vmem %s0, 56
  %v532 = vld [vmem:[%s531] sm:$0xff]
  %v533 = vld [vmem:[%s1] sm:$0xff]
  %v534 = vld [vmem:[%s1 + $0x8] sm:$0xff]
  %v535 = vld [vmem:[%s1 + $0x10] sm:$0xff]
  %v536 = vld [vmem:[%s1 + $0x18] sm:$0xff]
  %v537 = vsel %vm28, %v527, 0
  %539 = vmatpush.msra.mxu0 0.0
  %540 = vmatpush.msra.mxu0 0.0
  %541 = vmatpush.msra.mxu0 0.0
  %542 = vmatpush.msra.mxu0 0.0
  %543 = vmatpush.msra.mxu0 0.0
  %544 = vmatpush.msra.mxu0 0.0
  %545 = vmatpush.msra.mxu0 0.0
  %546 = vmatpush.msra.mxu0 0.0
  %547 = vmatpush.msra.mxu0 0.0
  %548 = vmatpush.msra.mxu0 0.0
  %549 = vmatpush.msra.mxu0 0.0
  %550 = vmatpush.msra.mxu0 0.0
  %551 = vmatpush.msra.mxu0 %v536
  %552 = vmatpush.msra.mxu0 %v535
  %553 = vmatpush.msra.mxu0 %v534
  %554 = vmatpush.msra.mxu0 %v533
  %555 = vmatmul.f32.gmra.mxu0 %v537
  %v556 = vpop.f32.mrf.mxu0
  %v557 = vadd.f32 0.0, %v556
  %558 = vdwg.mxu0
  %v559 = vadd.f32 %v532, %v557
  %v560 = vxor.u32 %v559, 2147483648
  %v561 = vmul.f32 %v560, 1.442695
  %v562 = vpow.pop %v561
  %v563 = vadd.f32 %v562, 1.0
  %v564 = vrcp.pop %v563
  %v565 = vmul.f32 %v563, %v564
  %v566 = vsub.f32 1.0, %v565
  %v567 = vmul.f32 %v564, %v566
  %v568 = vadd.f32 %v564, %v567
  %vm569 = vweird.f32 %v563
  %vm570 = vweird.f32 %v564
  %vm571 = vmor %vm569, %vm570
  %v572 = vsel %vm571, %v564, %v568
  %v573 = vand.u32 2147483647, %v563
  %vm574 = vcmp.eq.f32.partialorder %v573, 8.507059e+37
  %v575 = vand.u32 %v563, 2147483648
  %v576 = vor.u32 1.1754944e-38, %v575
  %v577 = vsel %vm574, %v576, %v572
  %v578 = vmul.f32 1.0, %v577
  %v579 = vtanh.pop %v559
  %v580 = vmul.f32 %v578, %v518
  %582 = vrot.lane.b32.xlu0 %v579, 64
  %v583 = vpop.permute.xlu0 %582
  %v585 = vmul.f32 %v578, %v583
  %587 = vrot.lane.b32.xlu0 %v585, 32
  %v588 = vpop.permute.xlu0 %587
  %v590 = vadd.f32 %v580, %v588
  %v591 = vtanh.pop %v590
  %593 = vrot.lane.b32.xlu0 %v591, 64
  %v594 = vpop.permute.xlu0 %593
  %v596 = vmul.f32 %v578, %v594
  %598 = vrot.lane.b32.xlu0 %v596, 32
  %v599 = vpop.permute.xlu0 %598
  %s601 = scalar_lea.vmem %s2, 56
  %602 = vst.msk [vmem:[%s601] sm:$0xff] %vm28, %v599
  %603 = vst.msk [vmem:[#allocation2] sm:$0xff] %vm28, %v599
  %605 = vrot.lane.b32.xlu0 %v590, 96
  %v606 = vpop.permute.xlu0 %605
  %608 = vst.msk [vmem:[#allocation3] sm:$0xff] %vm28, %v606
  // Predicated region
  $region14: #{encoder_lstm_forward.5} parent=0 // pred_check
    %p609 = pneg %p14
  $region15: #{encoder_lstm_forward.5} parent=0 // pred_check_branch
    %611 = sbr.rel (%p609) target = $region17
  $region16: #{encoder_lstm_forward.5} parent=0 // pred_region
    %612 = vst.msk [vmem:[%s3] sm:$0xff] %vm28, %v599
    %613 = vst.msk [vmem:[%s4] sm:$0xff] %vm28, %v606
  $region17: #{encoder_lstm_forward.5} parent=0 // pred_fallthru
    _
  // Predicated region
  $region18: #{encoder_lstm_forward.5} parent=0 // pred_check
    _
  $region19: #{encoder_lstm_forward.5} parent=0 // pred_check_branch
    %615 = sbr.rel (0) target = $region21
  $region20: #{encoder_lstm_forward.5} parent=0 // pred_region
    _
  $region21: #{encoder_lstm_forward.5} parent=0 // pred_fallthru
    _
  // Predicated region
  $region22: #{encoder_lstm_forward.5} parent=0 // pred_check
    _
  $region23: #{encoder_lstm_forward.5} parent=0 // pred_check_branch
    %617 = sbr.rel (0) target = $region25
  $region24: #{encoder_lstm_forward.5} parent=0 // pred_region
    _
  $region25: #{encoder_lstm_forward.5} parent=0 // pred_fallthru
    _
  // Predicated region
  $region26: #{encoder_lstm_forward.5} parent=0 // pred_check
    _
  $region27: #{encoder_lstm_forward.5} parent=0 // pred_check_branch
    %619 = sbr.rel (0) target = $region29
  $region28: #{encoder_lstm_forward.5} parent=0 // pred_region
    _
  $region29: #{encoder_lstm_forward.5} parent=0 // pred_fallthru
    _
  // Predicated region
  $region30: #{encoder_lstm_forward.5} parent=0 // pred_check
    _
  $region31: #{encoder_lstm_forward.5} parent=0 // pred_check_branch
    %621 = sbr.rel (0) target = $region33
  $region32: #{encoder_lstm_forward.5} parent=0 // pred_region
    _
  $region33: #{encoder_lstm_forward.5} parent=0 // pred_fallthru
    _
  // Predicated region
  $region34: #{encoder_lstm_forward.5} parent=0 // pred_check
    _
  $region35: #{encoder_lstm_forward.5} parent=0 // pred_check_branch
    %623 = sbr.rel (0) target = $region37
  $region36: #{encoder_lstm_forward.5} parent=0 // pred_region
    _
  $region37: #{encoder_lstm_forward.5} parent=0 // pred_fallthru
    _
  // Predicated region
  $region38: #{encoder_lstm_forward.5} parent=0 // pred_check
    _
  $region39: #{encoder_lstm_forward.5} parent=0 // pred_check_branch
    %625 = sbr.rel (0) target = $region41
  $region40: #{encoder_lstm_forward.5} parent=0 // pred_region
    _
  $region41: #{encoder_lstm_forward.5} parent=0 // pred_fallthru
    _

// kernel: encoder_lstm_forward.7
$region0: #{encoder_lstm_forward.7}
  #allocation0 [shape = 'u32[]', space=smem, size = 0x4, offset = 0x4, fixed_abs, tag = 'smem constant byte address 0x4 - core index']
  #allocation1 [shape = 'u32[72,128]{1,0:T(1,128)}', space=vmem, size = 0x9000, scoped, tag = 'internal scratch']
  #allocation2 [shape = 'f32[8,32]{1,0:T(8,128)}', space=vmem, size = 0x1000, scoped, tag = 'scratch operand']
  #allocation3 [shape = 'f32[8,32]{1,0:T(8,128)}', space=vmem, size = 0x1000, scoped, tag = 'scratch operand']
  %s0 = inlined_call_operand.vmem [shape: f32[8,8,128], index: 0, kind: input, shape index: {}]
  %s1 = inlined_call_operand.hbm [shape: f32[32,128], index: 1, kind: input, shape index: {}]
  %s2 = inlined_call_operand.vmem [shape: f32[8,8,32], index: 2, kind: output, shape index: {0}]
  %s3 = inlined_call_operand.vmem [shape: f32[8,32], index: 3, kind: output, shape index: {1}]
  %s4 = inlined_call_operand.vmem [shape: f32[8,32], index: 4, kind: output, shape index: {2}]
  %5 = xla_tuple %s2, %s3, %s4
  %s6 = sld [smem:[#allocation0]]
  $region46: #{encoder_lstm_forward.7} parent=0
    _
  %s8 = ssub.s32 1, %s6
  %s9 = scalar_select 0, %s8, %s6
  $region1: #{encoder_lstm_forward.7} parent=0
    #allocation4 [shape = 'u8[16384]{0}', space=vmem, size = 0x4000, scoped, tag = 'input window, operand 1, single buffered']
    #allocation5 [shape = 's32[1]{0}', space=sflag, size = 0x4, scoped, tag = 'scoped memory for encoder_lstm_forward.7']
    %10 = vsyncpa [#allocation5], 0
    // Predicated region
    $region2: #{encoder_lstm_forward.7} parent=1 // pred_check
      _
    $region3: #{encoder_lstm_forward.7} parent=1 // pred_check_branch
      %12 = sbr.rel (0) target = $region5
    $region4: #{encoder_lstm_forward.7} parent=1 // pred_region
      _
    $region5: #{encoder_lstm_forward.7} parent=1 // pred_fallthru
      _
    // Predicated region
    $region6: #{encoder_lstm_forward.7} parent=1 // pred_check
      _
    $region7: #{encoder_lstm_forward.7} parent=1 // pred_check_branch
      %14 = sbr.rel (0) target = $region9
    $region8: #{encoder_lstm_forward.7} parent=1 // pred_region
      %16 = vsyncadd [#allocation5], 0
      %s17 = sshll.u32 %s1, 4
      %s18 = int_to_ptr.hbm [resolvable:$true] %s17
      %s19 = sshll.u32 [#allocation4], 4
      %s20 = int_to_ptr.vmem [resolvable:$true] %s19
      %25 = dma.hbm_to_vmem [thread:$0]  %s18, 512, %s20, [#allocation5], 128, 128, 8
    $region9: #{encoder_lstm_forward.7} parent=1 // pred_fallthru
      _
    // Predicated region
    $region10: #{encoder_lstm_forward.7} parent=1 // pred_check
      _
    $region11: #{encoder_lstm_forward.7} parent=1 // pred_check_branch
      %27 = sbr.rel (0) target = $region13
    $region12: #{encoder_lstm_forward.7} parent=1 // pred_region
      %29 = dma.done [#allocation5], 512
    $region13: #{encoder_lstm_forward.7} parent=1 // pred_fallthru
      _
    %p30 = scmp.eq.s32.totalorder 0, 0
    // Predicated region
    $region14: #{encoder_lstm_forward.7} parent=1 // pred_check
      %p31 = pneg %p30
    $region15: #{encoder_lstm_forward.7} parent=1 // pred_check_branch
      %33 = sbr.rel (%p31) target = $region17
    $region16: #{encoder_lstm_forward.7} parent=1 // pred_region
      %vm34 = vcmask 261120
      %35 = vst.msk [vmem:[#allocation2] sm:$0xff] %vm34, 0.0
      %36 = vst.msk [vmem:[#allocation3] sm:$0xff] %vm34, 0.0
    $region17: #{encoder_lstm_forward.7} parent=1 // pred_fallthru
      _
    %v37 = vld [vmem:[#allocation2] sm:$0xff]
    %v38 = vld [vmem:[#allocation3] sm:$0xff]
    %v39 = vld [vmem:[%s0] sm:$0xff]
    %v40 = vld [vmem:[#allocation4] sm:$0xff]
    %v41 = vld [vmem:[#allocation4 + $0x8] sm:$0xff]
    %v42 = vld [vmem:[#allocation4 + $0x10] sm:$0xff]
    %v43 = vld [vmem:[#allocation4 + $0x18] sm:$0xff]
    %vm44 = vcmask 261120
    %v46 = vsel %vm44, %v37, 0
    %48 = vmatpush.msra.mxu0 0.0
    %49 = vmatpush.msra.mxu0 0.0
    %50 = vmatpush.msra.mxu0 0.0
    %51 = vmatpush.msra.mxu0 0.0
    %52 = vmatpush.msra.mxu0 0.0
    %53 = vmatpush.msra.mxu0 0.0
    %54 = vmatpush.msra.mxu0 0.0
    %55 = vmatpush.msra.mxu0 0.0
    %56 = vmatpush.msra.mxu0 0.0
    %57 = vmatpush.msra.mxu0 0.0
    %58 = vmatpush.msra.mxu0 0.0
    %59 = vmatpush.msra.mxu0 0.0
    %60 = vmatpush.msra.mxu0 %v43
    %61 = vmatpush.msra.mxu0 %v42
    %62 = vmatpush.msra.mxu0 %v41
    %63 = vmatpush.msra.mxu0 %v40
    %64 = vmatmul.f32.gmra.mxu0 %v46
    %v65 = vpop.f32.mrf.mxu0
    %v66 = vadd.f32 0.0, %v65
    %67 = vdwg.mxu0
    %v68 = vadd.f32 %v39, %v66
    %v69 = vxor.u32 %v68, 2147483648
    %v70 = vmul.f32 %v69, 1.442695
    %v71 = vpow.pop %v70
    %v72 = vadd.f32 %v71, 1.0
    %v73 = vrcp.pop %v72
    %v74 = vmul.f32 %v72, %v73
    %v75 = vsub.f32 1.0, %v74
    %v76 = vmul.f32 %v73, %v75
    %v77 = vadd.f32 %v73, %v76
    %vm78 = vweird.f32 %v72
    %vm79 = vweird.f32 %v73
    %vm80 = vmor %vm78, %vm79
    %v81 = vsel %vm80, %v73, %v77
    %v82 = vand.u32 2147483647, %v72
    %vm83 = vcmp.eq.f32.partialorder %v82, 8.507059e+37
    %v84 = vand.u32 %v72, 2147483648
    %v85 = vor.u32 1.1754944e-38, %v84
    %v86 = vsel %vm83, %v85, %v81
    %v87 = vmul.f32 1.0, %v86
    %v88 = vtanh.pop %v68
    %90 = vrot.lane.b32.xlu0 %v38, 32
    %v91 = vpop.permute.xlu0 %90
    %v93 = vmul.f32 %v87, %v91
    %95 = vrot.lane.b32.xlu0 %v88, 64
    %v96 = vpop.permute.xlu0 %95
    %v98 = vmul.f32 %v87, %v96
    %100 = vrot.lane.b32.xlu0 %v98, 32
    %v101 = vpop.permute.xlu0 %100
    %v103 = vadd.f32 %v93, %v101
    %v104 = vtanh.pop %v103
    %106 = vrot.lane.b32.xlu0 %v104, 64
    %v107 = vpop.permute.xlu0 %106
    %v109 = vmul.f32 %v87, %v107
    %111 = vrot.lane.b32.xlu0 %v109, 32
    %v112 = vpop.permute.xlu0 %111
    %114 = vst.msk [vmem:[%s2] sm:$0xff] %vm44, %v112
    %s115 = scalar_lea.vmem %s0, 8
    %v116 = vld [vmem:[%s115] sm:$0xff]
    %v117 = vld [vmem:[#allocation4] sm:$0xff]
    %v118 = vld [vmem:[#allocation4 + $0x8] sm:$0xff]
    %v119 = vld [vmem:[#allocation4 + $0x10] sm:$0xff]
    %v120 = vld [vmem:[#allocation4 + $0x18] sm:$0xff]
    %v121 = vsel %vm44, %v112, 0
    %123 = vmatpush.msra.mxu0 0.0
    %124 = vmatpush.msra.mxu0 0.0
    %125 = vmatpush.msra.mxu0 0.0
    %126 = vmatpush.msra.mxu0 0.0
    %127 = vmatpush.msra.mxu0 0.0
    %128 = vmatpush.msra.mxu0 0.0
    %129 = vmatpush.msra.mxu0 0.0
    %130 = vmatpush.msra.mxu0 0.0
    %131 = vmatpush.msra.mxu0 0.0
    %132 = vmatpush.msra.mxu0 0.0
    %133 = vmatpush.msra.mxu0 0.0
    %134 = vmatpush.msra.mxu0 0.0
    %135 = vmatpush.msra.mxu0 %v120
    %136 = vmatpush.msra.mxu0 %v119
    %137 = vmatpush.msra.mxu0 %v118
    %138 = vmatpush.msra.mxu0 %v117
    %139 = vmatmul.f32.gmra.mxu0 %v121
    %v140 = vpop.f32.mrf.mxu0
    %v141 = vadd.f32 0.0, %v140
    %142 = vdwg.mxu0
    %v143 = vadd.f32 %v116, %v141
    %v144 = vxor.u32 %v143, 2147483648
    %v145 = vmul.f32 %v144, 1.442695
    %v146 = vpow.pop %v145
    %v147 = vadd.f32 %v146, 1.0
    %v148 = vrcp.pop %v147
    %v149 = vmul.f32 %v147, %v148
    %v150 = vsub.f32 1.0, %v149
    %v151 = vmul.f32 %v148, %v150
    %v152 = vadd.f32 %v148, %v151
    %vm153 = vweird.f32 %v147
    %vm154 = vweird.f32 %v148
    %vm155 = vmor %vm153, %vm154
    %v156 = vsel %vm155, %v148, %v152
    %v157 = vand.u32 2147483647, %v147
    %vm158 = vcmp.eq.f32.partialorder %v157, 8.507059e+37
    %v159 = vand.u32 %v147, 2147483648
    %v160 = vor.u32 1.1754944e-38, %v159
    %v161 = vsel %vm158, %v160, %v156
    %v162 = vmul.f32 1.0, %v161
    %v163 = vtanh.pop %v143
    %v164 = vmul.f32 %v162, %v103
    %166 = vrot.lane.b32.xlu0 %v163, 64
    %v167 = vpop.permute.xlu0 %166
    %v169 = vmul.f32 %v162, %v167
    %171 = vrot.lane.b32.xlu0 %v169, 32
    %v172 = vpop.permute.xlu0 %171
    %v174 = vadd.f32 %v164, %v172
    %v175 = vtanh.pop %v174
    %177 = vrot.lane.b32.xlu0 %v175, 64
    %v178 = vpop.permute.xlu0 %177
    %v180 = vmul.f32 %v162, %v178
    %182 = vrot.lane.b32.xlu0 %v180, 32
    %v183 = vpop.permute.xlu0 %182
    %s185 = scalar_lea.vmem %s2, 8
    %186 = vst.msk [vmem:[%s185] sm:$0xff] %vm44, %v183
    %s187 = scalar_lea.vmem %s0, 16
    %v188 = vld [vmem:[%s187] sm:$0xff]
    %v189 = vld [vmem:[#allocation4] sm:$0xff]
    %v190 = vld [vmem:[#allocation4 + $0x8] sm:$0xff]
    %v191 = vld [vmem:[#allocation4 + $0x10] sm:$0xff]
    %v192 = vld [vmem:[#allocation4 + $0x18] sm:$0xff]
    %v193 = vsel %vm44, %v183, 0
    %195 = vmatpush.msra.mxu0 0.0
    %196 = vmatpush.msra.mxu0 0.0
    %197 = vmatpush.msra.mxu0 0.0
    %198 = vmatpush.msra.mxu0 0.0
    %199 = vmatpush.msra.mxu0 0.0
    %200 = vmatpush.msra.mxu0 0.0
    %201 = vmatpush.msra.mxu0 0.0
    %202 = vmatpush.msra.mxu0 0.0
    %203 = vmatpush.msra.mxu0 0.0
    %204 = vmatpush.msra.mxu0 0.0
    %205 = vmatpush.msra.mxu0 0.0
    %206 = vmatpush.msra.mxu0 0.0
    %207 = vmatpush.msra.mxu0 %v192
    %208 = vmatpush.msra.mxu0 %v191
    %209 = vmatpush.msra.mxu0 %v190
    %210 = vmatpush.msra.mxu0 %v189
    %211 = vmatmul.f32.gmra.mxu0 %v193
    %v212 = vpop.f32.mrf.mxu0
    %v213 = vadd.f32 0.0, %v212
    %214 = vdwg.mxu0
    %v215 = vadd.f32 %v188, %v213
    %v216 = vxor.u32 %v215, 2147483648
    %v217 = vmul.f32 %v216, 1.442695
    %v218 = vpow.pop %v217
    %v219 = vadd.f32 %v218, 1.0
    %v220 = vrcp.pop %v219
    %v221 = vmul.f32 %v219, %v220
    %v222 = vsub.f32 1.0, %v221
    %v223 = vmul.f32 %v220, %v222
    %v224 = vadd.f32 %v220, %v223
    %vm225 = vweird.f32 %v219
    %vm226 = vweird.f32 %v220
    %vm227 = vmor %vm225, %vm226
    %v228 = vsel %vm227, %v220, %v224
    %v229 = vand.u32 2147483647, %v219
    %vm230 = vcmp.eq.f32.partialorder %v229, 8.507059e+37
    %v231 = vand.u32 %v219, 2147483648
    %v232 = vor.u32 1.1754944e-38, %v231
    %v233 = vsel %vm230, %v232, %v228
    %v234 = vmul.f32 1.0, %v233
    %v235 = vtanh.pop %v215
    %v236 = vmul.f32 %v234, %v174
    %238 = vrot.lane.b32.xlu0 %v235, 64
    %v239 = vpop.permute.xlu0 %238
    %v241 = vmul.f32 %v234, %v239
    %243 = vrot.lane.b32.xlu0 %v241, 32
    %v244 = vpop.permute.xlu0 %243
    %v246 = vadd.f32 %v236, %v244
    %v247 = vtanh.pop %v246
    %249 = vrot.lane.b32.xlu0 %v247, 64
    %v250 = vpop.permute.xlu0 %249
    %v252 = vmul.f32 %v234, %v250
    %254 = vrot.lane.b32.xlu0 %v252, 32
    %v255 = vpop.permute.xlu0 %254
    %s257 = scalar_lea.vmem %s2, 16
    %258 = vst.msk [vmem:[%s257] sm:$0xff] %vm44, %v255
    %s259 = scalar_lea.vmem %s0, 24
    %v260 = vld [vmem:[%s259] sm:$0xff]
    %v261 = vld [vmem:[#allocation4] sm:$0xff]
    %v262 = vld [vmem:[#allocation4 + $0x8] sm:$0xff]
    %v263 = vld [vmem:[#allocation4 + $0x10] sm:$0xff]
    %v264 = vld [vmem:[#allocation4 + $0x18] sm:$0xff]
    %v265 = vsel %vm44, %v255, 0
    %267 = vmatpush.msra.mxu0 0.0
    %268 = vmatpush.msra.mxu0 0.0
    %269 = vmatpush.msra.mxu0 0.0
    %270 = vmatpush.msra.mxu0 0.0
    %271 = vmatpush.msra.mxu0 0.0
    %272 = vmatpush.msra.mxu0 0.0
    %273 = vmatpush.msra.mxu0 0.0
    %274 = vmatpush.msra.mxu0 0.0
    %275 = vmatpush.msra.mxu0 0.0
    %276 = vmatpush.msra.mxu0 0.0
    %277 = vmatpush.msra.mxu0 0.0
    %278 = vmatpush.msra.mxu0 0.0
    %279 = vmatpush.msra.mxu0 %v264
    %280 = vmatpush.msra.mxu0 %v263
    %281 = vmatpush.msra.mxu0 %v262
    %282 = vmatpush.msra.mxu0 %v261
    %283 = vmatmul.f32.gmra.mxu0 %v265
    %v284 = vpop.f32.mrf.mxu0
    %v285 = vadd.f32 0.0, %v284
    %286 = vdwg.mxu0
    %v287 = vadd.f32 %v260, %v285
    %v288 = vxor.u32 %v287, 2147483648
    %v289 = vmul.f32 %v288, 1.442695
    %v290 = vpow.pop %v289
    %v291 = vadd.f32 %v290, 1.0
    %v292 = vrcp.pop %v291
    %v293 = vmul.f32 %v291, %v292
    %v294 = vsub.f32 1.0, %v293
    %v295 = vmul.f32 %v292, %v294
    %v296 = vadd.f32 %v292, %v295
    %vm297 = vweird.f32 %v291
    %vm298 = vweird.f32 %v292
    %vm299 = vmor %vm297, %vm298
    %v300 = vsel %vm299, %v292, %v296
    %v301 = vand.u32 2147483647, %v291
    %vm302 = vcmp.eq.f32.partialorder %v301, 8.507059e+37
    %v303 = vand.u32 %v291, 2147483648
    %v304 = vor.u32 1.1754944e-38, %v303
    %v305 = vsel %vm302, %v304, %v300
    %v306 = vmul.f32 1.0, %v305
    %v307 = vtanh.pop %v287
    %v308 = vmul.f32 %v306, %v246
    %310 = vrot.lane.b32.xlu0 %v307, 64
    %v311 = vpop.permute.xlu0 %310
    %v313 = vmul.f32 %v306, %v311
    %315 = vrot.lane.b32.xlu0 %v313, 32
    %v316 = vpop.permute.xlu0 %315
    %v318 = vadd.f32 %v308, %v316
    %v319 = vtanh.pop %v318
    %321 = vrot.lane.b32.xlu0 %v319, 64
    %v322 = vpop.permute.xlu0 %321
    %v324 = vmul.f32 %v306, %v322
    %326 = vrot.lane.b32.xlu0 %v324, 32
    %v327 = vpop.permute.xlu0 %326
    %s329 = scalar_lea.vmem %s2, 24
    %330 = vst.msk [vmem:[%s329] sm:$0xff] %vm44, %v327
    %s331 = scalar_lea.vmem %s0, 32
    %v332 = vld [vmem:[%s331] sm:$0xff]
    %v333 = vld [vmem:[#allocation4] sm:$0xff]
    %v334 = vld [vmem:[#allocation4 + $0x8] sm:$0xff]
    %v335 = vld [vmem:[#allocation4 + $0x10] sm:$0xff]
    %v336 = vld [vmem:[#allocation4 + $0x18] sm:$0xff]
    %v337 = vsel %vm44, %v327, 0
    %339 = vmatpush.msra.mxu0 0.0
    %340 = vmatpush.msra.mxu0 0.0
    %341 = vmatpush.msra.mxu0 0.0
    %342 = vmatpush.msra.mxu0 0.0
    %343 = vmatpush.msra.mxu0 0.0
    %344 = vmatpush.msra.mxu0 0.0
    %345 = vmatpush.msra.mxu0 0.0
    %346 = vmatpush.msra.mxu0 0.0
    %347 = vmatpush.msra.mxu0 0.0
    %348 = vmatpush.msra.mxu0 0.0
    %349 = vmatpush.msra.mxu0 0.0
    %350 = vmatpush.msra.mxu0 0.0
    %351 = vmatpush.msra.mxu0 %v336
    %352 = vmatpush.msra.mxu0 %v335
    %353 = vmatpush.msra.mxu0 %v334
    %354 = vmatpush.msra.mxu0 %v333
    %355 = vmatmul.f32.gmra.mxu0 %v337
    %v356 = vpop.f32.mrf.mxu0
    %v357 = vadd.f32 0.0, %v356
    %358 = vdwg.mxu0
    %v359 = vadd.f32 %v332, %v357
    %v360 = vxor.u32 %v359, 2147483648
    %v361 = vmul.f32 %v360, 1.442695
    %v362 = vpow.pop %v361
    %v363 = vadd.f32 %v362, 1.0
    %v364 = vrcp.pop %v363
    %v365 = vmul.f32 %v363, %v364
    %v366 = vsub.f32 1.0, %v365
    %v367 = vmul.f32 %v364, %v366
    %v368 = vadd.f32 %v364, %v367
    %vm369 = vweird.f32 %v363
    %vm370 = vweird.f32 %v364
    %vm371 = vmor %vm369, %vm370
    %v372 = vsel %vm371, %v364, %v368
    %v373 = vand.u32 2147483647, %v363
    %vm374 = vcmp.eq.f32.partialorder %v373, 8.507059e+37
    %v375 = vand.u32 %v363, 2147483648
    %v376 = vor.u32 1.1754944e-38, %v375
    %v377 = vsel %vm374, %v376, %v372
    %v378 = vmul.f32 1.0, %v377
    %v379 = vtanh.pop %v359
    %v380 = vmul.f32 %v378, %v318
    %382 = vrot.lane.b32.xlu0 %v379, 64
    %v383 = vpop.permute.xlu0 %382
    %v385 = vmul.f32 %v378, %v383
    %387 = vrot.lane.b32.xlu0 %v385, 32
    %v388 = vpop.permute.xlu0 %387
    %v390 = vadd.f32 %v380, %v388
    %v391 = vtanh.pop %v390
    %393 = vrot.lane.b32.xlu0 %v391, 64
    %v394 = vpop.permute.xlu0 %393
    %v396 = vmul.f32 %v378, %v394
    %398 = vrot.lane.b32.xlu0 %v396, 32
    %v399 = vpop.permute.xlu0 %398
    %s401 = scalar_lea.vmem %s2, 32
    %402 = vst.msk [vmem:[%s401] sm:$0xff] %vm44, %v399
    %s403 = scalar_lea.vmem %s0, 40
    %v404 = vld [vmem:[%s403] sm:$0xff]
    %v405 = vld [vmem:[#allocation4] sm:$0xff]
    %v406 = vld [vmem:[#allocation4 + $0x8] sm:$0xff]
    %v407 = vld [vmem:[#allocation4 + $0x10] sm:$0xff]
    %v408 = vld [vmem:[#allocation4 + $0x18] sm:$0xff]
    %v409 = vsel %vm44, %v399, 0
    %411 = vmatpush.msra.mxu0 0.0
    %412 = vmatpush.msra.mxu0 0.0
    %413 = vmatpush.msra.mxu0 0.0
    %414 = vmatpush.msra.mxu0 0.0
    %415 = vmatpush.msra.mxu0 0.0
    %416 = vmatpush.msra.mxu0 0.0
    %417 = vmatpush.msra.mxu0 0.0
    %418 = vmatpush.msra.mxu0 0.0
    %419 = vmatpush.msra.mxu0 0.0
    %420 = vmatpush.msra.mxu0 0.0
    %421 = vmatpush.msra.mxu0 0.0
    %422 = vmatpush.msra.mxu0 0.0
    %423 = vmatpush.msra.mxu0 %v408
    %424 = vmatpush.msra.mxu0 %v407
    %425 = vmatpush.msra.mxu0 %v406
    %426 = vmatpush.msra.mxu0 %v405
    %427 = vmatmul.f32.gmra.mxu0 %v409
    %v428 = vpop.f32.mrf.mxu0
    %v429 = vadd.f32 0.0, %v428
    %430 = vdwg.mxu0
    %v431 = vadd.f32 %v404, %v429
    %v432 = vxor.u32 %v431, 2147483648
    %v433 = vmul.f32 %v432, 1.442695
    %v434 = vpow.pop %v433
    %v435 = vadd.f32 %v434, 1.0
    %v436 = vrcp.pop %v435
    %v437 = vmul.f32 %v435, %v436
    %v438 = vsub.f32 1.0, %v437
    %v439 = vmul.f32 %v436, %v438
    %v440 = vadd.f32 %v436, %v439
    %vm441 = vweird.f32 %v435
    %vm442 = vweird.f32 %v436
    %vm443 = vmor %vm441, %vm442
    %v444 = vsel %vm443, %v436, %v440
    %v445 = vand.u32 2147483647, %v435
    %vm446 = vcmp.eq.f32.partialorder %v445, 8.507059e+37
    %v447 = vand.u32 %v435, 2147483648
    %v448 = vor.u32 1.1754944e-38, %v447
    %v449 = vsel %vm446, %v448, %v444
    %v450 = vmul.f32 1.0, %v449
    %v451 = vtanh.pop %v431
    %v452 = vmul.f32 %v450, %v390
    %454 = vrot.lane.b32.xlu0 %v451, 64
    %v455 = vpop.permute.xlu0 %454
    %v457 = vmul.f32 %v450, %v455
    %459 = vrot.lane.b32.xlu0 %v457, 32
    %v460 = vpop.permute.xlu0 %459
    %v462 = vadd.f32 %v452, %v460
    %v463 = vtanh.pop %v462
    %465 = vrot.lane.b32.xlu0 %v463, 64
    %v466 = vpop.permute.xlu0 %465
    %v468 = vmul.f32 %v450, %v466
    %470 = vrot.lane.b32.xlu0 %v468, 32
    %v471 = vpop.permute.xlu0 %470
    %s473 = scalar_lea.vmem %s2, 40
    %474 = vst.msk [vmem:[%s473] sm:$0xff] %vm44, %v471
    %s475 = scalar_lea.vmem %s0, 48
    %v476 = vld [vmem:[%s475] sm:$0xff]
    %v477 = vld [vmem:[#allocation4] sm:$0xff]
    %v478 = vld [vmem:[#allocation4 + $0x8] sm:$0xff]
    %v479 = vld [vmem:[#allocation4 + $0x10] sm:$0xff]
    %v480 = vld [vmem:[#allocation4 + $0x18] sm:$0xff]
    %v481 = vsel %vm44, %v471, 0
    %483 = vmatpush.msra.mxu0 0.0
    %484 = vmatpush.msra.mxu0 0.0
    %485 = vmatpush.msra.mxu0 0.0
    %486 = vmatpush.msra.mxu0 0.0
    %487 = vmatpush.msra.mxu0 0.0
    %488 = vmatpush.msra.mxu0 0.0
    %489 = vmatpush.msra.mxu0 0.0
    %490 = vmatpush.msra.mxu0 0.0
    %491 = vmatpush.msra.mxu0 0.0
    %492 = vmatpush.msra.mxu0 0.0
    %493 = vmatpush.msra.mxu0 0.0
    %494 = vmatpush.msra.mxu0 0.0
    %495 = vmatpush.msra.mxu0 %v480
    %496 = vmatpush.msra.mxu0 %v479
    %497 = vmatpush.msra.mxu0 %v478
    %498 = vmatpush.msra.mxu0 %v477
    %499 = vmatmul.f32.gmra.mxu0 %v481
    %v500 = vpop.f32.mrf.mxu0
    %v501 = vadd.f32 0.0, %v500
    %502 = vdwg.mxu0
    %v503 = vadd.f32 %v476, %v501
    %v504 = vxor.u32 %v503, 2147483648
    %v505 = vmul.f32 %v504, 1.442695
    %v506 = vpow.pop %v505
    %v507 = vadd.f32 %v506, 1.0
    %v508 = vrcp.pop %v507
    %v509 = vmul.f32 %v507, %v508
    %v510 = vsub.f32 1.0, %v509
    %v511 = vmul.f32 %v508, %v510
    %v512 = vadd.f32 %v508, %v511
    %vm513 = vweird.f32 %v507
    %vm514 = vweird.f32 %v508
    %vm515 = vmor %vm513, %vm514
    %v516 = vsel %vm515, %v508, %v512
    %v517 = vand.u32 2147483647, %v507
    %vm518 = vcmp.eq.f32.partialorder %v517, 8.507059e+37
    %v519 = vand.u32 %v507, 2147483648
    %v520 = vor.u32 1.1754944e-38, %v519
    %v521 = vsel %vm518, %v520, %v516
    %v522 = vmul.f32 1.0, %v521
    %v523 = vtanh.pop %v503
    %v524 = vmul.f32 %v522, %v462
    %526 = vrot.lane.b32.xlu0 %v523, 64
    %v527 = vpop.permute.xlu0 %526
    %v529 = vmul.f32 %v522, %v527
    %531 = vrot.lane.b32.xlu0 %v529, 32
    %v532 = vpop.permute.xlu0 %531
    %v534 = vadd.f32 %v524, %v532
    %v535 = vtanh.pop %v534
    %537 = vrot.lane.b32.xlu0 %v535, 64
    %v538 = vpop.permute.xlu0 %537
    %v540 = vmul.f32 %v522, %v538
    %542 = vrot.lane.b32.xlu0 %v540, 32
    %v543 = vpop.permute.xlu0 %542
    %s545 = scalar_lea.vmem %s2, 48
    %546 = vst.msk [vmem:[%s545] sm:$0xff] %vm44, %v543
    %s547 = scalar_lea.vmem %s0, 56
    %v548 = vld [vmem:[%s547] sm:$0xff]
    %v549 = vld [vmem:[#allocation4] sm:$0xff]
    %v550 = vld [vmem:[#allocation4 + $0x8] sm:$0xff]
    %v551 = vld [vmem:[#allocation4 + $0x10] sm:$0xff]
    %v552 = vld [vmem:[#allocation4 + $0x18] sm:$0xff]
    %v553 = vsel %vm44, %v543, 0
    %555 = vmatpush.msra.mxu0 0.0
    %556 = vmatpush.msra.mxu0 0.0
    %557 = vmatpush.msra.mxu0 0.0
    %558 = vmatpush.msra.mxu0 0.0
    %559 = vmatpush.msra.mxu0 0.0
    %560 = vmatpush.msra.mxu0 0.0
    %561 = vmatpush.msra.mxu0 0.0
    %562 = vmatpush.msra.mxu0 0.0
    %563 = vmatpush.msra.mxu0 0.0
    %564 = vmatpush.msra.mxu0 0.0
    %565 = vmatpush.msra.mxu0 0.0
    %566 = vmatpush.msra.mxu0 0.0
    %567 = vmatpush.msra.mxu0 %v552
    %568 = vmatpush.msra.mxu0 %v551
    %569 = vmatpush.msra.mxu0 %v550
    %570 = vmatpush.msra.mxu0 %v549
    %571 = vmatmul.f32.gmra.mxu0 %v553
    %v572 = vpop.f32.mrf.mxu0
    %v573 = vadd.f32 0.0, %v572
    %574 = vdwg.mxu0
    %v575 = vadd.f32 %v548, %v573
    %v576 = vxor.u32 %v575, 2147483648
    %v577 = vmul.f32 %v576, 1.442695
    %v578 = vpow.pop %v577
    %v579 = vadd.f32 %v578, 1.0
    %v580 = vrcp.pop %v579
    %v581 = vmul.f32 %v579, %v580
    %v582 = vsub.f32 1.0, %v581
    %v583 = vmul.f32 %v580, %v582
    %v584 = vadd.f32 %v580, %v583
    %vm585 = vweird.f32 %v579
    %vm586 = vweird.f32 %v580
    %vm587 = vmor %vm585, %vm586
    %v588 = vsel %vm587, %v580, %v584
    %v589 = vand.u32 2147483647, %v579
    %vm590 = vcmp.eq.f32.partialorder %v589, 8.507059e+37
    %v591 = vand.u32 %v579, 2147483648
    %v592 = vor.u32 1.1754944e-38, %v591
    %v593 = vsel %vm590, %v592, %v588
    %v594 = vmul.f32 1.0, %v593
    %v595 = vtanh.pop %v575
    %v596 = vmul.f32 %v594, %v534
    %598 = vrot.lane.b32.xlu0 %v595, 64
    %v599 = vpop.permute.xlu0 %598
    %v601 = vmul.f32 %v594, %v599
    %603 = vrot.lane.b32.xlu0 %v601, 32
    %v604 = vpop.permute.xlu0 %603
    %v606 = vadd.f32 %v596, %v604
    %v607 = vtanh.pop %v606
    %609 = vrot.lane.b32.xlu0 %v607, 64
    %v610 = vpop.permute.xlu0 %609
    %v612 = vmul.f32 %v594, %v610
    %614 = vrot.lane.b32.xlu0 %v612, 32
    %v615 = vpop.permute.xlu0 %614
    %s617 = scalar_lea.vmem %s2, 56
    %618 = vst.msk [vmem:[%s617] sm:$0xff] %vm44, %v615
    %619 = vst.msk [vmem:[#allocation2] sm:$0xff] %vm44, %v615
    %621 = vrot.lane.b32.xlu0 %v606, 96
    %v622 = vpop.permute.xlu0 %621
    %624 = vst.msk [vmem:[#allocation3] sm:$0xff] %vm44, %v622
    // Predicated region
    $region18: #{encoder_lstm_forward.7} parent=1 // pred_check
      %p625 = pneg %p30
    $region19: #{encoder_lstm_forward.7} parent=1 // pred_check_branch
      %627 = sbr.rel (%p625) target = $region21
    $region20: #{encoder_lstm_forward.7} parent=1 // pred_region
      %628 = vst.msk [vmem:[%s3] sm:$0xff] %vm44, %v615
      %629 = vst.msk [vmem:[%s4] sm:$0xff] %vm44, %v622
    $region21: #{encoder_lstm_forward.7} parent=1 // pred_fallthru
      _
    // Predicated region
    $region22: #{encoder_lstm_forward.7} parent=1 // pred_check
      _
    $region23: #{encoder_lstm_forward.7} parent=1 // pred_check_branch
      %631 = sbr.rel (0) target = $region25
    $region24: #{encoder_lstm_forward.7} parent=1 // pred_region
      _
    $region25: #{encoder_lstm_forward.7} parent=1 // pred_fallthru
      _
    // Predicated region
    $region26: #{encoder_lstm_forward.7} parent=1 // pred_check
      _
    $region27: #{encoder_lstm_forward.7} parent=1 // pred_check_branch
      %633 = sbr.rel (0) target = $region29
    $region28: #{encoder_lstm_forward.7} parent=1 // pred_region
      _
    $region29: #{encoder_lstm_forward.7} parent=1 // pred_fallthru
      _
    // Predicated region
    $region30: #{encoder_lstm_forward.7} parent=1 // pred_check
      _
    $region31: #{encoder_lstm_forward.7} parent=1 // pred_check_branch
      %635 = sbr.rel (0) target = $region33
    $region32: #{encoder_lstm_forward.7} parent=1 // pred_region
      _
    $region33: #{encoder_lstm_forward.7} parent=1 // pred_fallthru
      _
    // Predicated region
    $region34: #{encoder_lstm_forward.7} parent=1 // pred_check
      _
    $region35: #{encoder_lstm_forward.7} parent=1 // pred_check_branch
      %637 = sbr.rel (0) target = $region37
    $region36: #{encoder_lstm_forward.7} parent=1 // pred_region
      _
    $region37: #{encoder_lstm_forward.7} parent=1 // pred_fallthru
      _
    // Predicated region
    $region38: #{encoder_lstm_forward.7} parent=1 // pred_check
      _
    $region39: #{encoder_lstm_forward.7} parent=1 // pred_check_branch
      %639 = sbr.rel (0) target = $region41
    $region40: #{encoder_lstm_forward.7} parent=1 // pred_region
      _
    $region41: #{encoder_lstm_forward.7} parent=1 // pred_fallthru
      _
    // Predicated region
    $region42: #{encoder_lstm_forward.7} parent=1 // pred_check
      _
    $region43: #{encoder_lstm_forward.7} parent=1 // pred_check_branch
      %641 = sbr.rel (0) target = $region45
    $region44: #{encoder_lstm_forward.7} parent=1 // pred_region
      _
    $region45: #{encoder_lstm_forward.7} parent=1 // pred_fallthru
      _
    %642 = vsyncpa [#allocation5], 1

</llo_original>
